<compile_context>
chip_gen: v7x
topology: tpu7x:2x2x1
jax: 0.10.0
libtpu: 0.0.40
codegen_flags: <defaults>
</compile_context>

<pallas_src>
import math

import jax
import jax.numpy as jnp
from jax import lax
from jax.experimental import pallas as pl
from jax.experimental.pallas import tpu as pltpu


def _make_cma_kernel(bt, S, D):
    """Build the kernel for one batch tile.

    q/k/v refs : (bt*S, D) bfloat16   (activations pre-flattened in the wrapper)
    w*_refs    : (D, D)    bfloat16   (already (in, out); Wq/bq carry 1/sqrt(D))
    b*_refs    : (1, D)    float32
    ctx_ref    : (bt, S, D) float32
    attn_ref   : (bt, S, S) attn_dtype
    """

    def kernel(q_ref, k_ref, v_ref,
               wq_ref, bq_ref, wk_ref, bk_ref, wv_ref, bv_ref,
               ctx_ref, attn_ref):
        # Linear projections: bf16 MXU operands, f32 accumulation, f32 bias add.
        # M = bt*S rows per matmul (good MXU fill even for small S).
        Q = jnp.dot(q_ref[...], wq_ref[...],
                    preferred_element_type=jnp.float32) + bq_ref[...]
        K = jnp.dot(k_ref[...], wk_ref[...],
                    preferred_element_type=jnp.float32) + bk_ref[...]
        V = jnp.dot(v_ref[...], wv_ref[...],
                    preferred_element_type=jnp.float32) + bv_ref[...]

        Qb = Q.reshape(bt, S, D).astype(jnp.bfloat16)
        Kb = K.reshape(bt, S, D).astype(jnp.bfloat16)
        Vb = V.reshape(bt, S, D).astype(jnp.bfloat16)

        # Scaled scores: contract the last dims directly (no K.T / XLU
        # transpose). The 1/sqrt(D) scale is folded into Wq/bq in the wrapper.
        scores = lax.dot_general(
            Qb, Kb, (((2,), (2,)), ((0,), (0,))),
            preferred_element_type=jnp.float32)

        # Numerically stable softmax in f32. The denominator is only (bt,S,1),
        # so use an exact reciprocal (division): the returned weights row-sum
        # to 1 at f32 precision, matching nn.Softmax.
        m = jnp.max(scores, axis=-1, keepdims=True)
        e = jnp.exp(scores - m)
        s = jnp.sum(e, axis=-1, keepdims=True)
        weights = e * (1.0 / s)

        # Context: (bt,S,S) @ (bt,S,D) -> (bt,S,D), bf16 MXU / f32 accumulation.
        context = lax.dot_general(
            weights.astype(jnp.bfloat16), Vb, (((2,), (1,)), ((0,), (0,))),
            preferred_element_type=jnp.float32)

        ctx_ref[...] = context.astype(ctx_ref.dtype)
        attn_ref[...] = weights.astype(attn_ref.dtype)

    return kernel


def _vmem_block_bytes(bt, S, D, attn_bytes):
    """Estimated peak VMEM for one grid step: double-buffered I/O blocks,
    double-buffered weights, and all in-kernel intermediates (v7x only has
    64 MiB VMEM, so everything is counted)."""
    rows = bt * S
    io = 2 * (3 * rows * D * 2            # q/k/v bf16 input blocks (double-buffered)
              + rows * D * 4              # context f32 output block
              + rows * S * attn_bytes)    # attention-weights output block
    wgt = 2 * 3 * (D * D * 2 + D * 4)     # bf16 weights + f32 biases (double-buffered)
    tmp = (3 * rows * D * 4               # f32 Q / K / V
           + 3 * rows * D * 2             # bf16 Qb / Kb / Vb
           + 3 * rows * S * 4             # f32 scores / exp / weights
           + rows * S * 2                 # bf16 probabilities for the PV matmul
           + rows * D * 4)                # f32 context accumulator
    return io + wgt + tmp


def _pick_batch_tile(B, S, D, attn_bytes, *, target_rows=1024,
                     multistep_min_rows=256, vmem_budget=36 * 1024 * 1024):
    """Largest divisor bt of B such that the block fits the (v7x-safe) VMEM
    budget and bt*S stays near the MXU M sweet spot.  A >=2-step grid (pipeline
    depth / v7x megacore sharding) is only preferred when it still keeps
    bt*S >= multistep_min_rows -- otherwise collapse to a single big step."""
    divisors = [bt for bt in range(1, B + 1) if B % bt == 0]
    feasible = [bt for bt in divisors
                if (bt * S % 8 == 0 or bt == B)
                and bt * S <= target_rows
                and _vmem_block_bytes(bt, S, D, attn_bytes) <= vmem_budget]
    if not feasible:
        # TODO(synk): for very large S even bt=1 may not fit; would need a
        # flash-style KV grid axis (online softmax + accumulator scratch).
        feasible = [1]
    multi = [bt for bt in feasible if B // bt >= 2 and bt * S >= multistep_min_rows]
    return max(multi) if multi else max(feasible)


def cross_modal_attention(query, key, value, params, *, batch_tile=None,
                          attn_dtype=jnp.float32):
    """query/key/value: (B, S, D) float32.  params: dict of W*, b* (PyTorch layout).

    Returns (context (B,S,D) f32, attention_weights (B,S,S) attn_dtype)."""
    B, S, D = query.shape
    attn_bytes = jnp.dtype(attn_dtype).itemsize
    bt = batch_tile if batch_tile is not None else _pick_batch_tile(B, S, D, attn_bytes)
    assert B % bt == 0, "batch tile must divide batch"

    scale = 1.0 / math.sqrt(D)
    # nn.Linear stores weight as (out, in); transpose to (in, out) for x @ W and
    # pre-cast to bf16 (halves weight DMA). The 1/sqrt(D) score scale is folded
    # into the query projection so the kernel does no score multiply.
    wq = (params["wq"].T * scale).astype(jnp.bfloat16)
    wk = params["wk"].T.astype(jnp.bfloat16)
    wv = params["wv"].T.astype(jnp.bfloat16)
    bq = (params["bq"] * scale).reshape(1, D).astype(jnp.float32)
    bk = params["bk"].reshape(1, D).astype(jnp.float32)
    bv = params["bv"].reshape(1, D).astype(jnp.float32)

    # Pre-cast + pre-flatten activations: bf16 halves activation DMA / VMEM and
    # the (B*S, D) layout lets the projection matmuls see M = bt*S rows directly
    # (the wrapper reshape is free; the kernel does no bf16 relayout reshape).
    qf = query.reshape(B * S, D).astype(jnp.bfloat16)
    kf = key.reshape(B * S, D).astype(jnp.bfloat16)
    vf = value.reshape(B * S, D).astype(jnp.bfloat16)

    rows = bt * S
    row_spec = pl.BlockSpec((rows, D), lambda i: (i, 0))
    whole2d = lambda i: (0, 0)
    tile3d = lambda i: (i, 0, 0)

    out_shapes = (
        jax.ShapeDtypeStruct((B, S, D), jnp.float32),   # context
        jax.ShapeDtypeStruct((B, S, S), attn_dtype),    # attention weights
    )

    footprint = _vmem_block_bytes(bt, S, D, attn_bytes)
    # Scoped VMEM: cover the real footprint + headroom, capped at 40 MiB so the
    # same configuration stays safe under v7x's 64 MiB physical VMEM.
    vmem_limit = int(min(max(footprint + (4 << 20), 16 << 20), 40 << 20))

    # TODO(synk): for S >~ 1k the full SxS scores/weights block dominates VMEM; a
    # flash-style KV grid axis would bound it, but the module's full (B,S,S)
    # attention-weights output already bounds practical S.
    # TODO(synk): for small S the attn output is lane-sparse (last dim S < 128);
    # a lane-dense (1, bt*S*S) out-block would speed stores, but the in-kernel
    # relayout crosses (8,128) tiles -- left as-is pending measurement.
    # TODO(synk): for large D, set pipeline_mode=pl.Buffered(1) on the constant
    # weight/bias specs to drop the dead second buffer (negligible at D=256).

    kernel = _make_cma_kernel(bt, S, D)
    return pl.pallas_call(
        kernel,
        out_shape=out_shapes,
        grid_spec=pltpu.PrefetchScalarGridSpec(
            num_scalar_prefetch=0,
            grid=(B // bt,),
            in_specs=[
                row_spec,                              # query  (bf16, flattened rows)
                row_spec,                              # key
                row_spec,                              # value
                pl.BlockSpec((D, D), whole2d),         # Wq (scaled), bf16
                pl.BlockSpec((1, D), whole2d),         # bq (scaled), f32
                pl.BlockSpec((D, D), whole2d),         # Wk
                pl.BlockSpec((1, D), whole2d),         # bk
                pl.BlockSpec((D, D), whole2d),         # Wv
                pl.BlockSpec((1, D), whole2d),         # bv
            ],
            out_specs=[
                pl.BlockSpec((bt, S, D), tile3d),      # context
                pl.BlockSpec((bt, S, S), tile3d),      # attention weights
            ],
        ),
        compiler_params=pltpu.CompilerParams(
            dimension_semantics=("parallel",),
            vmem_limit_bytes=vmem_limit,
        ),
    )(qf, kf, vf, wq, bq, wk, bk, wv, bv)


def reference(query, key, value, params):
    """Pure-JAX (f32) mirror of the PyTorch forward, for correctness checking."""
    Q = query @ params["wq"].T + params["bq"]
    K = key @ params["wk"].T + params["bk"]
    V = value @ params["wv"].T + params["bv"]
    scores = jnp.einsum("bqd,bkd->bqk", Q, K) / math.sqrt(key.shape[-1])
    w = jax.nn.softmax(scores, axis=-1)
    ctx = jnp.einsum("bqk,bkd->bqd", w, V)
    return ctx, w


if __name__ == "__main__":
    # Small shapes consistent with the module: embed_dim kept lane-aligned.
    B, S, D = 4, 8, 256

    key0 = jax.random.PRNGKey(0)
    ks = jax.random.split(key0, 9)

    query = jax.random.normal(ks[0], (B, S, D), dtype=jnp.float32)
    key_in = jax.random.normal(ks[1], (B, S, D), dtype=jnp.float32)
    value = jax.random.normal(ks[2], (B, S, D), dtype=jnp.float32)

    # Deterministic parameter init (nn.Linear layout: weight (out, in), bias (out,))
    bound = 1.0 / math.sqrt(D)
    params = {
        "wq": jax.random.uniform(ks[3], (D, D), jnp.float32, -bound, bound),
        "bq": jax.random.uniform(ks[4], (D,), jnp.float32, -bound, bound),
        "wk": jax.random.uniform(ks[5], (D, D), jnp.float32, -bound, bound),
        "bk": jax.random.uniform(ks[6], (D,), jnp.float32, -bound, bound),
        "wv": jax.random.uniform(ks[7], (D, D), jnp.float32, -bound, bound),
        "bv": jax.random.uniform(ks[8], (D,), jnp.float32, -bound, bound),
    }

    ctx, attn = cross_modal_attention(query, key_in, value, params)
    jax.block_until_ready((ctx, attn))

    ctx_ref, attn_ref = reference(query, key_in, value, params)
    # bf16 MXU inputs/weights: compare against the f32 reference with
    # appropriately loosened (but still meaningful) tolerances.
    assert jnp.allclose(ctx, ctx_ref, atol=3e-2, rtol=3e-2), "context mismatch"
    assert jnp.allclose(attn, attn_ref, atol=1e-2, rtol=1e-2), "attn mismatch"
    # Exact softmax division in-kernel -> rows sum to 1 at f32 precision.
    assert jnp.allclose(jnp.sum(attn, axis=-1), 1.0, atol=1e-3), "softmax rows"

    print("KERNEL_OK")
</pallas_src>

<mosaic_0001>
module attributes {stable_mosaic.version = 11 : i64} {
  func.func @kernel(%arg0: i32, %arg1: memref<32x256xbf16, #tpu.memory_space<vmem>>, %arg2: memref<32x256xbf16, #tpu.memory_space<vmem>>, %arg3: memref<32x256xbf16, #tpu.memory_space<vmem>>, %arg4: memref<256x256xbf16, #tpu.memory_space<vmem>>, %arg5: memref<1x256xf32, #tpu.memory_space<vmem>>, %arg6: memref<256x256xbf16, #tpu.memory_space<vmem>>, %arg7: memref<1x256xf32, #tpu.memory_space<vmem>>, %arg8: memref<256x256xbf16, #tpu.memory_space<vmem>>, %arg9: memref<1x256xf32, #tpu.memory_space<vmem>>, %arg10: memref<4x8x256xf32, #tpu.memory_space<vmem>>, %arg11: memref<4x8x8xf32, #tpu.memory_space<vmem>>) attributes {dimension_semantics = [#tpu.dimension_semantics<parallel>], iteration_bounds = array<i64: 1>, scalar_prefetch = 0 : i64, scratch_operands = 0 : i64, tpu.core_type = #tpu.core_type<tc>, window_params = [{transform_indices = @transform_0, window_bounds = array<i64: 32, 256>}, {transform_indices = @transform_1, window_bounds = array<i64: 32, 256>}, {transform_indices = @transform_2, window_bounds = array<i64: 32, 256>}, {pipeline_mode = #tpu.pipeline_mode<synchronous>, transform_indices = @transform_3, window_bounds = array<i64: 256, 256>}, {pipeline_mode = #tpu.pipeline_mode<synchronous>, transform_indices = @transform_4, window_bounds = array<i64: 1, 256>}, {pipeline_mode = #tpu.pipeline_mode<synchronous>, transform_indices = @transform_5, window_bounds = array<i64: 256, 256>}, {pipeline_mode = #tpu.pipeline_mode<synchronous>, transform_indices = @transform_6, window_bounds = array<i64: 1, 256>}, {pipeline_mode = #tpu.pipeline_mode<synchronous>, transform_indices = @transform_7, window_bounds = array<i64: 256, 256>}, {pipeline_mode = #tpu.pipeline_mode<synchronous>, transform_indices = @transform_8, window_bounds = array<i64: 1, 256>}, {transform_indices = @transform_9, window_bounds = array<i64: 4, 8, 256>}, {transform_indices = @transform_10, window_bounds = array<i64: 4, 8, 8>}]} {
    %c0 = arith.constant 0 : index
    %c0_0 = arith.constant 0 : index
    %0 = vector.load %arg1[%c0, %c0_0] : memref<32x256xbf16, #tpu.memory_space<vmem>>, vector<32x256xbf16>
    %c0_1 = arith.constant 0 : index
    %c0_2 = arith.constant 0 : index
    %1 = vector.load %arg4[%c0_1, %c0_2] : memref<256x256xbf16, #tpu.memory_space<vmem>>, vector<256x256xbf16>
    %cst = arith.constant dense<0.000000e+00> : vector<32x256xf32>
    %2 = tpu.matmul %0, %1, %cst {dimension_numbers = #tpu.dot_dimension_numbers<[1], [0], [0], [1], [0, 0, 1, 1], [], []>} : vector<32x256xbf16>, vector<256x256xbf16>, vector<32x256xf32> -> vector<32x256xf32>
    %c0_3 = arith.constant 0 : index
    %c0_4 = arith.constant 0 : index
    %3 = vector.load %arg5[%c0_3, %c0_4] : memref<1x256xf32, #tpu.memory_space<vmem>>, vector<1x256xf32>
    %4 = vector.broadcast %3 : vector<1x256xf32> to vector<32x256xf32>
    %5 = arith.addf %2, %4 : vector<32x256xf32>
    %c0_5 = arith.constant 0 : index
    %c0_6 = arith.constant 0 : index
    %6 = vector.load %arg2[%c0_5, %c0_6] : memref<32x256xbf16, #tpu.memory_space<vmem>>, vector<32x256xbf16>
    %c0_7 = arith.constant 0 : index
    %c0_8 = arith.constant 0 : index
    %7 = vector.load %arg6[%c0_7, %c0_8] : memref<256x256xbf16, #tpu.memory_space<vmem>>, vector<256x256xbf16>
    %cst_9 = arith.constant dense<0.000000e+00> : vector<32x256xf32>
    %8 = tpu.matmul %6, %7, %cst_9 {dimension_numbers = #tpu.dot_dimension_numbers<[1], [0], [0], [1], [0, 0, 1, 1], [], []>} : vector<32x256xbf16>, vector<256x256xbf16>, vector<32x256xf32> -> vector<32x256xf32>
    %c0_10 = arith.constant 0 : index
    %c0_11 = arith.constant 0 : index
    %9 = vector.load %arg7[%c0_10, %c0_11] : memref<1x256xf32, #tpu.memory_space<vmem>>, vector<1x256xf32>
    %10 = vector.broadcast %9 : vector<1x256xf32> to vector<32x256xf32>
    %11 = arith.addf %8, %10 : vector<32x256xf32>
    %c0_12 = arith.constant 0 : index
    %c0_13 = arith.constant 0 : index
    %12 = vector.load %arg3[%c0_12, %c0_13] : memref<32x256xbf16, #tpu.memory_space<vmem>>, vector<32x256xbf16>
    %c0_14 = arith.constant 0 : index
    %c0_15 = arith.constant 0 : index
    %13 = vector.load %arg8[%c0_14, %c0_15] : memref<256x256xbf16, #tpu.memory_space<vmem>>, vector<256x256xbf16>
    %cst_16 = arith.constant dense<0.000000e+00> : vector<32x256xf32>
    %14 = tpu.matmul %12, %13, %cst_16 {dimension_numbers = #tpu.dot_dimension_numbers<[1], [0], [0], [1], [0, 0, 1, 1], [], []>} : vector<32x256xbf16>, vector<256x256xbf16>, vector<32x256xf32> -> vector<32x256xf32>
    %c0_17 = arith.constant 0 : index
    %c0_18 = arith.constant 0 : index
    %15 = vector.load %arg9[%c0_17, %c0_18] : memref<1x256xf32, #tpu.memory_space<vmem>>, vector<1x256xf32>
    %16 = vector.broadcast %15 : vector<1x256xf32> to vector<32x256xf32>
    %17 = arith.addf %14, %16 : vector<32x256xf32>
    %18 = vector.shape_cast %5 : vector<32x256xf32> to vector<4x8x256xf32>
    %19 = arith.truncf %18 : vector<4x8x256xf32> to vector<4x8x256xbf16>
    %20 = vector.shape_cast %11 : vector<32x256xf32> to vector<4x8x256xf32>
    %21 = arith.truncf %20 : vector<4x8x256xf32> to vector<4x8x256xbf16>
    %22 = vector.shape_cast %17 : vector<32x256xf32> to vector<4x8x256xf32>
    %23 = arith.truncf %22 : vector<4x8x256xf32> to vector<4x8x256xbf16>
    %cst_19 = arith.constant dense<0.000000e+00> : vector<4x8x8xf32>
    %24 = tpu.matmul %19, %21, %cst_19 {dimension_numbers = #tpu.dot_dimension_numbers<[2], [2], [1], [1], [0, 0, 0, 1, 1, 1], [0], [0]>} : vector<4x8x256xbf16>, vector<4x8x256xbf16>, vector<4x8x8xf32> -> vector<4x8x8xf32>
    %cst_20 = arith.constant dense<0xFF800000> : vector<4x8xf32>
    %25 = vector.multi_reduction <maximumf>, %24, %cst_20 [2] : vector<4x8x8xf32> to vector<4x8xf32>
    %26 = vector.shape_cast %25 : vector<4x8xf32> to vector<4x8x1xf32>
    %27 = vector.broadcast %26 : vector<4x8x1xf32> to vector<4x8x8xf32>
    %28 = arith.subf %24, %27 : vector<4x8x8xf32>
    %29 = math.exp %28 : vector<4x8x8xf32>
    %cst_21 = arith.constant dense<0.000000e+00> : vector<4x8xf32>
    %30 = vector.multi_reduction <add>, %29, %cst_21 [2] : vector<4x8x8xf32> to vector<4x8xf32>
    %31 = vector.shape_cast %30 : vector<4x8xf32> to vector<4x8x1xf32>
    %cst_22 = arith.constant 1.000000e+00 : f32
    %32 = vector.broadcast %cst_22 : f32 to vector<4x8x1xf32>
    %33 = arith.divf %32, %31 : vector<4x8x1xf32>
    %34 = vector.broadcast %33 : vector<4x8x1xf32> to vector<4x8x8xf32>
    %35 = arith.mulf %29, %34 : vector<4x8x8xf32>
    %36 = arith.truncf %35 : vector<4x8x8xf32> to vector<4x8x8xbf16>
    %cst_23 = arith.constant dense<0.000000e+00> : vector<4x8x256xf32>
    %37 = tpu.matmul %36, %23, %cst_23 {dimension_numbers = #tpu.dot_dimension_numbers<[2], [1], [1], [2], [0, 0, 0, 1, 1, 2], [0], [0]>} : vector<4x8x8xbf16>, vector<4x8x256xbf16>, vector<4x8x256xf32> -> vector<4x8x256xf32>
    %c0_24 = arith.constant 0 : index
    %c0_25 = arith.constant 0 : index
    %c0_26 = arith.constant 0 : index
    %38 = vector.load %arg10[%c0_24, %c0_25, %c0_26] : memref<4x8x256xf32, #tpu.memory_space<vmem>>, vector<4x8x256xf32>
    tpu.vector_store %arg10[%c0_24, %c0_25, %c0_26], %37 {strides = array<i32>} : memref<4x8x256xf32, #tpu.memory_space<vmem>>, vector<4x8x256xf32>,
    %c0_27 = arith.constant 0 : index
    %c0_28 = arith.constant 0 : index
    %c0_29 = arith.constant 0 : index
    %39 = vector.load %arg11[%c0_27, %c0_28, %c0_29] : memref<4x8x8xf32, #tpu.memory_space<vmem>>, vector<4x8x8xf32>
    tpu.vector_store %arg11[%c0_27, %c0_28, %c0_29], %35 {strides = array<i32>} : memref<4x8x8xf32, #tpu.memory_space<vmem>>, vector<4x8x8xf32>,
    return
  }
  func.func @transform_0(%arg0: i32) -> (i32, i32) {
    %c0_i32 = arith.constant 0 : i32
    %c0_i32_0 = arith.constant 0 : i32
    return %arg0, %c0_i32 : i32, i32
  }
  func.func @transform_1(%arg0: i32) -> (i32, i32) {
    %c0_i32 = arith.constant 0 : i32
    %c0_i32_0 = arith.constant 0 : i32
    return %arg0, %c0_i32 : i32, i32
  }
  func.func @transform_2(%arg0: i32) -> (i32, i32) {
    %c0_i32 = arith.constant 0 : i32
    %c0_i32_0 = arith.constant 0 : i32
    return %arg0, %c0_i32 : i32, i32
  }
  func.func @transform_3(%arg0: i32) -> (i32, i32) {
    %c0_i32 = arith.constant 0 : i32
    %c0_i32_0 = arith.constant 0 : i32
    %c0_i32_1 = arith.constant 0 : i32
    return %c0_i32, %c0_i32_0 : i32, i32
  }
  func.func @transform_4(%arg0: i32) -> (i32, i32) {
    %c0_i32 = arith.constant 0 : i32
    %c0_i32_0 = arith.constant 0 : i32
    %c0_i32_1 = arith.constant 0 : i32
    return %c0_i32, %c0_i32_0 : i32, i32
  }
  func.func @transform_5(%arg0: i32) -> (i32, i32) {
    %c0_i32 = arith.constant 0 : i32
    %c0_i32_0 = arith.constant 0 : i32
    %c0_i32_1 = arith.constant 0 : i32
    return %c0_i32, %c0_i32_0 : i32, i32
  }
  func.func @transform_6(%arg0: i32) -> (i32, i32) {
    %c0_i32 = arith.constant 0 : i32
    %c0_i32_0 = arith.constant 0 : i32
    %c0_i32_1 = arith.constant 0 : i32
    return %c0_i32, %c0_i32_0 : i32, i32
  }
  func.func @transform_7(%arg0: i32) -> (i32, i32) {
    %c0_i32 = arith.constant 0 : i32
    %c0_i32_0 = arith.constant 0 : i32
    %c0_i32_1 = arith.constant 0 : i32
    return %c0_i32, %c0_i32_0 : i32, i32
  }
  func.func @transform_8(%arg0: i32) -> (i32, i32) {
    %c0_i32 = arith.constant 0 : i32
    %c0_i32_0 = arith.constant 0 : i32
    %c0_i32_1 = arith.constant 0 : i32
    return %c0_i32, %c0_i32_0 : i32, i32
  }
  func.func @transform_9(%arg0: i32) -> (i32, i32, i32) {
    %c0_i32 = arith.constant 0 : i32
    %c0_i32_0 = arith.constant 0 : i32
    %c0_i32_1 = arith.constant 0 : i32
    return %arg0, %c0_i32, %c0_i32_0 : i32, i32, i32
  }
  func.func @transform_10(%arg0: i32) -> (i32, i32, i32) {
    %c0_i32 = arith.constant 0 : i32
    %c0_i32_0 = arith.constant 0 : i32
    %c0_i32_1 = arith.constant 0 : i32
    return %arg0, %c0_i32, %c0_i32_0 : i32, i32, i32
  }
}

</mosaic_0001>

<llo_original>
// kernel: tpu_custom_call.1
$region0: #{tpu_custom_call.1}
  #allocation0 [shape = 'u32[]', space=smem, size = 0x4, offset = 0x4, fixed_abs, tag = 'smem constant byte address 0x4 - core index']
  #allocation1 [shape = 'u32[144,128]{1,0:T(1,128)}', space=vmem, size = 0x12000, scoped, tag = 'internal scratch']
  %s0 = inlined_call_operand.hbm [shape: bf16[32,256], index: 0, kind: input, shape index: {}]
  %s1 = inlined_call_operand.hbm [shape: bf16[32,256], index: 1, kind: input, shape index: {}]
  %s2 = inlined_call_operand.hbm [shape: bf16[32,256], index: 2, kind: input, shape index: {}]
  %s3 = inlined_call_operand.hbm [shape: bf16[256,256], index: 3, kind: input, shape index: {}]
  %s4 = inlined_call_operand.vmem [shape: f32[1,256], index: 4, kind: input, shape index: {}]
  %s5 = inlined_call_operand.hbm [shape: bf16[256,256], index: 5, kind: input, shape index: {}]
  %s6 = inlined_call_operand.vmem [shape: f32[1,256], index: 6, kind: input, shape index: {}]
  %s7 = inlined_call_operand.hbm [shape: bf16[256,256], index: 7, kind: input, shape index: {}]
  %s8 = inlined_call_operand.vmem [shape: f32[1,256], index: 8, kind: input, shape index: {}]
  %s9 = inlined_call_operand.hbm [shape: f32[4,8,256], index: 9, kind: output, shape index: {0}]
  %s10 = inlined_call_operand.hbm [shape: f32[4,8,8], index: 10, kind: output, shape index: {1}]
  %11 = xla_tuple %s9, %s10
  %s12 = sld [smem:[#allocation0]]
  $region78: #{tpu_custom_call.1} parent=0
    _
  %s14 = ssub.s32 1, %s12
  %s15 = scalar_select 0, %s14, %s12
  $region1: #{tpu_custom_call.1} parent=0
    #allocation2 [shape = 'u8[16384]{0}', space=vmem, size = 0x4000, scoped, tag = 'input window, operand 0, single buffered']
    #allocation3 [shape = 's32[1]{0}', space=sflag, size = 0x4, scoped, tag = 'scoped memory for tpu_custom_call.1']
    #allocation4 [shape = 's32[1]{0}', space=sflag, size = 0x4, scoped, tag = 'scoped memory for tpu_custom_call.1']
    #allocation5 [shape = 'u8[16384]{0}', space=vmem, size = 0x4000, scoped, tag = 'input window, operand 1, single buffered']
    #allocation6 [shape = 's32[1]{0}', space=sflag, size = 0x4, scoped, tag = 'scoped memory for tpu_custom_call.1']
    #allocation7 [shape = 'u8[16384]{0}', space=vmem, size = 0x4000, scoped, tag = 'input window, operand 2, single buffered']
    #allocation8 [shape = 'u8[131072]{0}', space=vmem, size = 0x20000, scoped, tag = 'input window, operand 3, single buffered']
    #allocation9 [shape = 's32[1]{0}', space=sflag, size = 0x4, scoped, tag = 'scoped memory for tpu_custom_call.1']
    #allocation10 [shape = 'u8[131072]{0}', space=vmem, size = 0x20000, scoped, tag = 'input window, operand 5, single buffered']
    #allocation11 [shape = 'u8[131072]{0}', space=vmem, size = 0x20000, scoped, tag = 'input window, operand 7, single buffered']
    #allocation12 [shape = 's32[1]{0}', space=sflag, size = 0x4, scoped, tag = 'scoped memory for tpu_custom_call.1']
    #allocation13 [shape = 'u8[32768]{0}', space=vmem, size = 0x8000, scoped, tag = 'output window, operand 0, single buffered']
    #allocation14 [shape = 'u8[16384]{0}', space=vmem, size = 0x4000, scoped, tag = 'output window, operand 1, single buffered']
    #allocation15 [shape = 's32[1]{0}', space=sflag, size = 0x4, scoped, tag = 'scoped memory for tpu_custom_call.1']
    %16 = vsyncpa [#allocation3], 0
    %17 = vsyncpa [#allocation6], 0
    %18 = vsyncpa [#allocation9], 0
    %19 = vsyncpa [#allocation12], 0
    %20 = vsyncpa [#allocation4], 0
    %21 = vsyncpa [#allocation15], 0
    // Predicated region
    $region2: #{tpu_custom_call.1} parent=1 // pred_check
      _
    $region3: #{tpu_custom_call.1} parent=1 // pred_check_branch
      %23 = sbr.rel (0) target = $region5
    $region4: #{tpu_custom_call.1} parent=1 // pred_region
      %s25 = ssub.s32 512, 512
      %26 = vsyncadd [#allocation3], %s25
      %s27 = sshll.u32 [#allocation2], 4
      %s28 = int_to_ptr.vmem [resolvable:$true] %s27
      %33 = dma.hbm_to_vmem [thread:$0]  %s0, 512, %s28, [#allocation3], 128, 128, 8
    $region5: #{tpu_custom_call.1} parent=1 // pred_fallthru
      _
    // Predicated region
    $region6: #{tpu_custom_call.1} parent=1 // pred_check
      _
    $region7: #{tpu_custom_call.1} parent=1 // pred_check_branch
      %35 = sbr.rel (0) target = $region9
    $region8: #{tpu_custom_call.1} parent=1 // pred_region
      %s37 = ssub.s32 512, 512
      %38 = vsyncadd [#allocation6], %s37
      %s39 = sshll.u32 [#allocation5], 4
      %s40 = int_to_ptr.vmem [resolvable:$true] %s39
      %45 = dma.hbm_to_vmem [thread:$0]  %s1, 512, %s40, [#allocation6], 128, 128, 8
    $region9: #{tpu_custom_call.1} parent=1 // pred_fallthru
      _
    // Predicated region
    $region10: #{tpu_custom_call.1} parent=1 // pred_check
      _
    $region11: #{tpu_custom_call.1} parent=1 // pred_check_branch
      %47 = sbr.rel (0) target = $region13
    $region12: #{tpu_custom_call.1} parent=1 // pred_region
      %s49 = ssub.s32 512, 512
      %50 = vsyncadd [#allocation6], %s49
      %s51 = sshll.u32 [#allocation7], 4
      %s52 = int_to_ptr.vmem [resolvable:$true] %s51
      %57 = dma.hbm_to_vmem [thread:$0]  %s2, 512, %s52, [#allocation6], 128, 128, 8
    $region13: #{tpu_custom_call.1} parent=1 // pred_fallthru
      _
    // Predicated region
    $region14: #{tpu_custom_call.1} parent=1 // pred_check
      _
    $region15: #{tpu_custom_call.1} parent=1 // pred_check_branch
      %59 = sbr.rel (0) target = $region17
    $region16: #{tpu_custom_call.1} parent=1 // pred_region
      %s61 = ssub.s32 4096, 4096
      %62 = vsyncadd [#allocation9], %s61
      %s63 = sshll.u32 [#allocation8], 4
      %s64 = int_to_ptr.vmem [resolvable:$true] %s63
      %69 = dma.hbm_to_vmem [thread:$0]  %s3, 4096, %s64, [#allocation9], 128, 128, 8
    $region17: #{tpu_custom_call.1} parent=1 // pred_fallthru
      _
    // Predicated region
    $region18: #{tpu_custom_call.1} parent=1 // pred_check
      _
    $region19: #{tpu_custom_call.1} parent=1 // pred_check_branch
      %71 = sbr.rel (0) target = $region21
    $region20: #{tpu_custom_call.1} parent=1 // pred_region
      _
    $region21: #{tpu_custom_call.1} parent=1 // pred_fallthru
      _
    // Predicated region
    $region22: #{tpu_custom_call.1} parent=1 // pred_check
      _
    $region23: #{tpu_custom_call.1} parent=1 // pred_check_branch
      %73 = sbr.rel (0) target = $region25
    $region24: #{tpu_custom_call.1} parent=1 // pred_region
      %s75 = ssub.s32 4096, 4096
      %76 = vsyncadd [#allocation9], %s75
      %s77 = sshll.u32 [#allocation10], 4
      %s78 = int_to_ptr.vmem [resolvable:$true] %s77
      %83 = dma.hbm_to_vmem [thread:$0]  %s5, 4096, %s78, [#allocation9], 128, 128, 8
    $region25: #{tpu_custom_call.1} parent=1 // pred_fallthru
      _
    // Predicated region
    $region26: #{tpu_custom_call.1} parent=1 // pred_check
      _
    $region27: #{tpu_custom_call.1} parent=1 // pred_check_branch
      %85 = sbr.rel (0) target = $region29
    $region28: #{tpu_custom_call.1} parent=1 // pred_region
      _
    $region29: #{tpu_custom_call.1} parent=1 // pred_fallthru
      _
    // Predicated region
    $region30: #{tpu_custom_call.1} parent=1 // pred_check
      _
    $region31: #{tpu_custom_call.1} parent=1 // pred_check_branch
      %87 = sbr.rel (0) target = $region33
    $region32: #{tpu_custom_call.1} parent=1 // pred_region
      %s89 = ssub.s32 4096, 4096
      %90 = vsyncadd [#allocation12], %s89
      %s91 = sshll.u32 [#allocation11], 4
      %s92 = int_to_ptr.vmem [resolvable:$true] %s91
      %97 = dma.hbm_to_vmem [thread:$0]  %s7, 4096, %s92, [#allocation12], 128, 128, 8
    $region33: #{tpu_custom_call.1} parent=1 // pred_fallthru
      _
    // Predicated region
    $region34: #{tpu_custom_call.1} parent=1 // pred_check
      _
    $region35: #{tpu_custom_call.1} parent=1 // pred_check_branch
      %99 = sbr.rel (0) target = $region37
    $region36: #{tpu_custom_call.1} parent=1 // pred_region
      _
    $region37: #{tpu_custom_call.1} parent=1 // pred_fallthru
      _
    // Predicated region
    $region38: #{tpu_custom_call.1} parent=1 // pred_check
      _
    $region39: #{tpu_custom_call.1} parent=1 // pred_check_branch
      %101 = sbr.rel (0) target = $region41
    $region40: #{tpu_custom_call.1} parent=1 // pred_region
      %102 = dma.done [#allocation3], 512
    $region41: #{tpu_custom_call.1} parent=1 // pred_fallthru
      _
    // Predicated region
    $region42: #{tpu_custom_call.1} parent=1 // pred_check
      _
    $region43: #{tpu_custom_call.1} parent=1 // pred_check_branch
      %104 = sbr.rel (0) target = $region45
    $region44: #{tpu_custom_call.1} parent=1 // pred_region
      %105 = dma.done [#allocation6], 512
    $region45: #{tpu_custom_call.1} parent=1 // pred_fallthru
      _
    // Predicated region
    $region46: #{tpu_custom_call.1} parent=1 // pred_check
      _
    $region47: #{tpu_custom_call.1} parent=1 // pred_check_branch
      %107 = sbr.rel (0) target = $region49
    $region48: #{tpu_custom_call.1} parent=1 // pred_region
      %108 = dma.done [#allocation6], 512
    $region49: #{tpu_custom_call.1} parent=1 // pred_fallthru
      _
    // Predicated region
    $region50: #{tpu_custom_call.1} parent=1 // pred_check
      _
    $region51: #{tpu_custom_call.1} parent=1 // pred_check_branch
      %110 = sbr.rel (0) target = $region53
    $region52: #{tpu_custom_call.1} parent=1 // pred_region
      %111 = dma.done [#allocation9], 4096
    $region53: #{tpu_custom_call.1} parent=1 // pred_fallthru
      _
    // Predicated region
    $region54: #{tpu_custom_call.1} parent=1 // pred_check
      _
    $region55: #{tpu_custom_call.1} parent=1 // pred_check_branch
      %113 = sbr.rel (0) target = $region57
    $region56: #{tpu_custom_call.1} parent=1 // pred_region
      %114 = dma.done [#allocation9], 4096
    $region57: #{tpu_custom_call.1} parent=1 // pred_fallthru
      _
    // Predicated region
    $region58: #{tpu_custom_call.1} parent=1 // pred_check
      _
    $region59: #{tpu_custom_call.1} parent=1 // pred_check_branch
      %116 = sbr.rel (0) target = $region61
    $region60: #{tpu_custom_call.1} parent=1 // pred_region
      %117 = dma.done [#allocation12], 4096
    $region61: #{tpu_custom_call.1} parent=1 // pred_fallthru
      _
    %v119 = vld [vmem:[#allocation2] sm:$0xff]
    %v120 = vld [vmem:[#allocation2 + $0x8] sm:$0xff]
    %v121 = vld [vmem:[#allocation2 + $0x10] sm:$0xff]
    %v122 = vld [vmem:[#allocation2 + $0x18] sm:$0xff]
    %v123 = vld [vmem:[#allocation8] sm:$0xff]
    %v124 = vld [vmem:[#allocation8 + $0x8] sm:$0xff]
    %v125 = vld [vmem:[#allocation8 + $0x10] sm:$0xff]
    %v126 = vld [vmem:[#allocation8 + $0x18] sm:$0xff]
    %v127 = vld [vmem:[#allocation8 + $0x20] sm:$0xff]
    %v128 = vld [vmem:[#allocation8 + $0x28] sm:$0xff]
    %v129 = vld [vmem:[#allocation8 + $0x30] sm:$0xff]
    %v130 = vld [vmem:[#allocation8 + $0x38] sm:$0xff]
    %v131 = vld [vmem:[#allocation8 + $0x40] sm:$0xff]
    %v132 = vld [vmem:[#allocation8 + $0x48] sm:$0xff]
    %v133 = vld [vmem:[#allocation8 + $0x50] sm:$0xff]
    %v134 = vld [vmem:[#allocation8 + $0x58] sm:$0xff]
    %v135 = vld [vmem:[#allocation8 + $0x60] sm:$0xff]
    %v136 = vld [vmem:[#allocation8 + $0x68] sm:$0xff]
    %v137 = vld [vmem:[#allocation8 + $0x70] sm:$0xff]
    %v138 = vld [vmem:[#allocation8 + $0x78] sm:$0xff]
    %v139 = vld [vmem:[#allocation8 + $0x80] sm:$0xff]
    %v140 = vld [vmem:[#allocation8 + $0x88] sm:$0xff]
    %v141 = vld [vmem:[#allocation8 + $0x90] sm:$0xff]
    %v142 = vld [vmem:[#allocation8 + $0x98] sm:$0xff]
    %v143 = vld [vmem:[#allocation8 + $0xa0] sm:$0xff]
    %v144 = vld [vmem:[#allocation8 + $0xa8] sm:$0xff]
    %v145 = vld [vmem:[#allocation8 + $0xb0] sm:$0xff]
    %v146 = vld [vmem:[#allocation8 + $0xb8] sm:$0xff]
    %v147 = vld [vmem:[#allocation8 + $0xc0] sm:$0xff]
    %v148 = vld [vmem:[#allocation8 + $0xc8] sm:$0xff]
    %v149 = vld [vmem:[#allocation8 + $0xd0] sm:$0xff]
    %v150 = vld [vmem:[#allocation8 + $0xd8] sm:$0xff]
    %v151 = vld [vmem:[#allocation8 + $0xe0] sm:$0xff]
    %v152 = vld [vmem:[#allocation8 + $0xe8] sm:$0xff]
    %v153 = vld [vmem:[#allocation8 + $0xf0] sm:$0xff]
    %v154 = vld [vmem:[#allocation8 + $0xf8] sm:$0xff]
    %v155 = vld [vmem:[%s4] sm:$0x3]
    %v157 = vlaneseq
    %v158 = vshrl.u32 %v157, 7
    %v159 = vsub.s32 0, %v158
    %v160 = vrot.slane %v155, %v159
    %v161 = vlaneseq
    %v162 = vshrl.u32 %v161, 7
    %v163 = vsub.s32 1, %v162
    %v164 = vrot.slane %v155, %v163
    %v171 = vunpack.c.l.b16 %v119
    %v172 = vunpack.c.h.b16 %v119
    %v173 = vunpack.c.l.b16 %v120
    %v174 = vunpack.c.h.b16 %v120
    %v175 = vunpack.c.l.b16 %v121
    %v176 = vunpack.c.h.b16 %v121
    %v177 = vunpack.c.l.b16 %v122
    %v178 = vunpack.c.h.b16 %v122
    %v179 = vpack.c.b16 %v173, %v171
    %v180 = vpack.c.b16 %v174, %v172
    %v181 = vpack.c.b16 %v177, %v175
    %v182 = vpack.c.b16 %v178, %v176
    %v219 = vunpack.c.l.b16 %v123
    %v220 = vunpack.c.h.b16 %v123
    %v221 = vunpack.c.l.b16 %v124
    %v222 = vunpack.c.h.b16 %v124
    %v223 = vunpack.c.l.b16 %v125
    %v224 = vunpack.c.h.b16 %v125
    %v225 = vunpack.c.l.b16 %v126
    %v226 = vunpack.c.h.b16 %v126
    %v227 = vunpack.c.l.b16 %v127
    %v228 = vunpack.c.h.b16 %v127
    %v229 = vunpack.c.l.b16 %v128
    %v230 = vunpack.c.h.b16 %v128
    %v231 = vunpack.c.l.b16 %v129
    %v232 = vunpack.c.h.b16 %v129
    %v233 = vunpack.c.l.b16 %v130
    %v234 = vunpack.c.h.b16 %v130
    %v235 = vunpack.c.l.b16 %v131
    %v236 = vunpack.c.h.b16 %v131
    %v237 = vunpack.c.l.b16 %v132
    %v238 = vunpack.c.h.b16 %v132
    %v239 = vunpack.c.l.b16 %v133
    %v240 = vunpack.c.h.b16 %v133
    %v241 = vunpack.c.l.b16 %v134
    %v242 = vunpack.c.h.b16 %v134
    %v243 = vunpack.c.l.b16 %v135
    %v244 = vunpack.c.h.b16 %v135
    %v245 = vunpack.c.l.b16 %v136
    %v246 = vunpack.c.h.b16 %v136
    %v247 = vunpack.c.l.b16 %v137
    %v248 = vunpack.c.h.b16 %v137
    %v249 = vunpack.c.l.b16 %v138
    %v250 = vunpack.c.h.b16 %v138
    %v251 = vunpack.c.l.b16 %v139
    %v252 = vunpack.c.h.b16 %v139
    %v253 = vunpack.c.l.b16 %v140
    %v254 = vunpack.c.h.b16 %v140
    %v255 = vunpack.c.l.b16 %v141
    %v256 = vunpack.c.h.b16 %v141
    %v257 = vunpack.c.l.b16 %v142
    %v258 = vunpack.c.h.b16 %v142
    %v259 = vunpack.c.l.b16 %v143
    %v260 = vunpack.c.h.b16 %v143
    %v261 = vunpack.c.l.b16 %v144
    %v262 = vunpack.c.h.b16 %v144
    %v263 = vunpack.c.l.b16 %v145
    %v264 = vunpack.c.h.b16 %v145
    %v265 = vunpack.c.l.b16 %v146
    %v266 = vunpack.c.h.b16 %v146
    %v267 = vunpack.c.l.b16 %v147
    %v268 = vunpack.c.h.b16 %v147
    %v269 = vunpack.c.l.b16 %v148
    %v270 = vunpack.c.h.b16 %v148
    %v271 = vunpack.c.l.b16 %v149
    %v272 = vunpack.c.h.b16 %v149
    %v273 = vunpack.c.l.b16 %v150
    %v274 = vunpack.c.h.b16 %v150
    %v275 = vunpack.c.l.b16 %v151
    %v276 = vunpack.c.h.b16 %v151
    %v277 = vunpack.c.l.b16 %v152
    %v278 = vunpack.c.h.b16 %v152
    %v279 = vunpack.c.l.b16 %v153
    %v280 = vunpack.c.h.b16 %v153
    %v281 = vunpack.c.l.b16 %v154
    %v282 = vunpack.c.h.b16 %v154
    %v283 = vpack.c.b16 %v221, %v219
    %v284 = vpack.c.b16 %v222, %v220
    %v285 = vpack.c.b16 %v225, %v223
    %v286 = vpack.c.b16 %v226, %v224
    %v287 = vpack.c.b16 %v229, %v227
    %v288 = vpack.c.b16 %v230, %v228
    %v289 = vpack.c.b16 %v233, %v231
    %v290 = vpack.c.b16 %v234, %v232
    %v291 = vpack.c.b16 %v237, %v235
    %v292 = vpack.c.b16 %v238, %v236
    %v293 = vpack.c.b16 %v241, %v239
    %v294 = vpack.c.b16 %v242, %v240
    %v295 = vpack.c.b16 %v245, %v243
    %v296 = vpack.c.b16 %v246, %v244
    %v297 = vpack.c.b16 %v249, %v247
    %v298 = vpack.c.b16 %v250, %v248
    %v299 = vpack.c.b16 %v253, %v251
    %v300 = vpack.c.b16 %v254, %v252
    %v301 = vpack.c.b16 %v257, %v255
    %v302 = vpack.c.b16 %v258, %v256
    %v303 = vpack.c.b16 %v261, %v259
    %v304 = vpack.c.b16 %v262, %v260
    %v305 = vpack.c.b16 %v265, %v263
    %v306 = vpack.c.b16 %v266, %v264
    %v307 = vpack.c.b16 %v269, %v267
    %v308 = vpack.c.b16 %v270, %v268
    %v309 = vpack.c.b16 %v273, %v271
    %v310 = vpack.c.b16 %v274, %v272
    %v311 = vpack.c.b16 %v277, %v275
    %v312 = vpack.c.b16 %v278, %v276
    %v313 = vpack.c.b16 %v281, %v279
    %v314 = vpack.c.b16 %v282, %v280
    %347 = vmatprep.subr.bf16.mxu0 %v284
    %348 = vmatpush1.bf16.msra.mxu0 %v283
    %349 = vmatprep.subr.bf16.mxu0 %v286
    %350 = vmatpush1.bf16.msra.mxu0 %v285
    %351 = vmatprep.subr.bf16.mxu0 %v288
    %352 = vmatpush1.bf16.msra.mxu0 %v287
    %353 = vmatprep.subr.bf16.mxu0 %v290
    %354 = vmatpush1.bf16.msra.mxu0 %v289
    %355 = vmatprep.subr.bf16.mxu0 %v292
    %356 = vmatpush1.bf16.msra.mxu0 %v291
    %357 = vmatprep.subr.bf16.mxu0 %v294
    %358 = vmatpush1.bf16.msra.mxu0 %v293
    %359 = vmatprep.subr.bf16.mxu0 %v296
    %360 = vmatpush1.bf16.msra.mxu0 %v295
    %361 = vmatprep.subr.bf16.mxu0 %v298
    %362 = vmatpush1.bf16.msra.mxu0 %v297
    %363 = vmatprep.subr.bf16.mxu0 %v300
    %364 = vmatpush1.bf16.msra.mxu0 %v299
    %365 = vmatprep.subr.bf16.mxu0 %v302
    %366 = vmatpush1.bf16.msra.mxu0 %v301
    %367 = vmatprep.subr.bf16.mxu0 %v304
    %368 = vmatpush1.bf16.msra.mxu0 %v303
    %369 = vmatprep.subr.bf16.mxu0 %v306
    %370 = vmatpush1.bf16.msra.mxu0 %v305
    %371 = vmatprep.subr.bf16.mxu0 %v308
    %372 = vmatpush1.bf16.msra.mxu0 %v307
    %373 = vmatprep.subr.bf16.mxu0 %v310
    %374 = vmatpush1.bf16.msra.mxu0 %v309
    %375 = vmatprep.subr.bf16.mxu0 %v312
    %376 = vmatpush1.bf16.msra.mxu0 %v311
    %377 = vmatprep.subr.bf16.mxu0 %v314
    %378 = vmatpush1.bf16.msra.mxu0 %v313
    %379 = vmatprep.mubr.bf16.mxu0 %v180
    %380 = vmatmul.mubr.bf16.gmra.mrb[0].mxu0 %v179
    %v381 = vpop.f32.mrb[0].mxu0
    %v382 = vadd.f32 %v160, %v381
    %v383 = vpop.f32.mrb[0].mxu0
    %v384 = vadd.f32 %v164, %v383
    %v385 = vpop.f32.mrb[0].mxu0
    %v386 = vadd.f32 %v160, %v385
    %v387 = vpop.f32.mrb[0].mxu0
    %v388 = vadd.f32 %v164, %v387
    %389 = vmatprep.mubr.bf16.mxu0 %v182
    %390 = vmatmul.mubr.bf16.gmra.mrb[0].mxu0 %v181
    %v391 = vpop.f32.mrb[0].mxu0
    %v392 = vadd.f32 %v160, %v391
    %v393 = vpop.f32.mrb[0].mxu0
    %v394 = vadd.f32 %v164, %v393
    %v395 = vpop.f32.mrb[0].mxu0
    %v396 = vadd.f32 %v160, %v395
    %v397 = vpop.f32.mrb[0].mxu0
    %v398 = vadd.f32 %v164, %v397
    %399 = vdwg.mxu0
    %v400 = vld [vmem:[#allocation5] sm:$0xff]
    %v401 = vld [vmem:[#allocation5 + $0x8] sm:$0xff]
    %v402 = vld [vmem:[#allocation5 + $0x10] sm:$0xff]
    %v403 = vld [vmem:[#allocation5 + $0x18] sm:$0xff]
    %v404 = vld [vmem:[#allocation10] sm:$0xff]
    %v405 = vld [vmem:[#allocation10 + $0x8] sm:$0xff]
    %v406 = vld [vmem:[#allocation10 + $0x10] sm:$0xff]
    %v407 = vld [vmem:[#allocation10 + $0x18] sm:$0xff]
    %v408 = vld [vmem:[#allocation10 + $0x20] sm:$0xff]
    %v409 = vld [vmem:[#allocation10 + $0x28] sm:$0xff]
    %v410 = vld [vmem:[#allocation10 + $0x30] sm:$0xff]
    %v411 = vld [vmem:[#allocation10 + $0x38] sm:$0xff]
    %v412 = vld [vmem:[#allocation10 + $0x40] sm:$0xff]
    %v413 = vld [vmem:[#allocation10 + $0x48] sm:$0xff]
    %v414 = vld [vmem:[#allocation10 + $0x50] sm:$0xff]
    %v415 = vld [vmem:[#allocation10 + $0x58] sm:$0xff]
    %v416 = vld [vmem:[#allocation10 + $0x60] sm:$0xff]
    %v417 = vld [vmem:[#allocation10 + $0x68] sm:$0xff]
    %v418 = vld [vmem:[#allocation10 + $0x70] sm:$0xff]
    %v419 = vld [vmem:[#allocation10 + $0x78] sm:$0xff]
    %v420 = vld [vmem:[#allocation10 + $0x80] sm:$0xff]
    %v421 = vld [vmem:[#allocation10 + $0x88] sm:$0xff]
    %v422 = vld [vmem:[#allocation10 + $0x90] sm:$0xff]
    %v423 = vld [vmem:[#allocation10 + $0x98] sm:$0xff]
    %v424 = vld [vmem:[#allocation10 + $0xa0] sm:$0xff]
    %v425 = vld [vmem:[#allocation10 + $0xa8] sm:$0xff]
    %v426 = vld [vmem:[#allocation10 + $0xb0] sm:$0xff]
    %v427 = vld [vmem:[#allocation10 + $0xb8] sm:$0xff]
    %v428 = vld [vmem:[#allocation10 + $0xc0] sm:$0xff]
    %v429 = vld [vmem:[#allocation10 + $0xc8] sm:$0xff]
    %v430 = vld [vmem:[#allocation10 + $0xd0] sm:$0xff]
    %v431 = vld [vmem:[#allocation10 + $0xd8] sm:$0xff]
    %v432 = vld [vmem:[#allocation10 + $0xe0] sm:$0xff]
    %v433 = vld [vmem:[#allocation10 + $0xe8] sm:$0xff]
    %v434 = vld [vmem:[#allocation10 + $0xf0] sm:$0xff]
    %v435 = vld [vmem:[#allocation10 + $0xf8] sm:$0xff]
    %v436 = vld [vmem:[%s6] sm:$0x3]
    %v438 = vlaneseq
    %v439 = vshrl.u32 %v438, 7
    %v440 = vsub.s32 0, %v439
    %v441 = vrot.slane %v436, %v440
    %v442 = vlaneseq
    %v443 = vshrl.u32 %v442, 7
    %v444 = vsub.s32 1, %v443
    %v445 = vrot.slane %v436, %v444
    %v452 = vunpack.c.l.b16 %v400
    %v453 = vunpack.c.h.b16 %v400
    %v454 = vunpack.c.l.b16 %v401
    %v455 = vunpack.c.h.b16 %v401
    %v456 = vunpack.c.l.b16 %v402
    %v457 = vunpack.c.h.b16 %v402
    %v458 = vunpack.c.l.b16 %v403
    %v459 = vunpack.c.h.b16 %v403
    %v460 = vpack.c.b16 %v454, %v452
    %v461 = vpack.c.b16 %v455, %v453
    %v462 = vpack.c.b16 %v458, %v456
    %v463 = vpack.c.b16 %v459, %v457
    %v500 = vunpack.c.l.b16 %v404
    %v501 = vunpack.c.h.b16 %v404
    %v502 = vunpack.c.l.b16 %v405
    %v503 = vunpack.c.h.b16 %v405
    %v504 = vunpack.c.l.b16 %v406
    %v505 = vunpack.c.h.b16 %v406
    %v506 = vunpack.c.l.b16 %v407
    %v507 = vunpack.c.h.b16 %v407
    %v508 = vunpack.c.l.b16 %v408
    %v509 = vunpack.c.h.b16 %v408
    %v510 = vunpack.c.l.b16 %v409
    %v511 = vunpack.c.h.b16 %v409
    %v512 = vunpack.c.l.b16 %v410
    %v513 = vunpack.c.h.b16 %v410
    %v514 = vunpack.c.l.b16 %v411
    %v515 = vunpack.c.h.b16 %v411
    %v516 = vunpack.c.l.b16 %v412
    %v517 = vunpack.c.h.b16 %v412
    %v518 = vunpack.c.l.b16 %v413
    %v519 = vunpack.c.h.b16 %v413
    %v520 = vunpack.c.l.b16 %v414
    %v521 = vunpack.c.h.b16 %v414
    %v522 = vunpack.c.l.b16 %v415
    %v523 = vunpack.c.h.b16 %v415
    %v524 = vunpack.c.l.b16 %v416
    %v525 = vunpack.c.h.b16 %v416
    %v526 = vunpack.c.l.b16 %v417
    %v527 = vunpack.c.h.b16 %v417
    %v528 = vunpack.c.l.b16 %v418
    %v529 = vunpack.c.h.b16 %v418
    %v530 = vunpack.c.l.b16 %v419
    %v531 = vunpack.c.h.b16 %v419
    %v532 = vunpack.c.l.b16 %v420
    %v533 = vunpack.c.h.b16 %v420
    %v534 = vunpack.c.l.b16 %v421
    %v535 = vunpack.c.h.b16 %v421
    %v536 = vunpack.c.l.b16 %v422
    %v537 = vunpack.c.h.b16 %v422
    %v538 = vunpack.c.l.b16 %v423
    %v539 = vunpack.c.h.b16 %v423
    %v540 = vunpack.c.l.b16 %v424
    %v541 = vunpack.c.h.b16 %v424
    %v542 = vunpack.c.l.b16 %v425
    %v543 = vunpack.c.h.b16 %v425
    %v544 = vunpack.c.l.b16 %v426
    %v545 = vunpack.c.h.b16 %v426
    %v546 = vunpack.c.l.b16 %v427
    %v547 = vunpack.c.h.b16 %v427
    %v548 = vunpack.c.l.b16 %v428
    %v549 = vunpack.c.h.b16 %v428
    %v550 = vunpack.c.l.b16 %v429
    %v551 = vunpack.c.h.b16 %v429
    %v552 = vunpack.c.l.b16 %v430
    %v553 = vunpack.c.h.b16 %v430
    %v554 = vunpack.c.l.b16 %v431
    %v555 = vunpack.c.h.b16 %v431
    %v556 = vunpack.c.l.b16 %v432
    %v557 = vunpack.c.h.b16 %v432
    %v558 = vunpack.c.l.b16 %v433
    %v559 = vunpack.c.h.b16 %v433
    %v560 = vunpack.c.l.b16 %v434
    %v561 = vunpack.c.h.b16 %v434
    %v562 = vunpack.c.l.b16 %v435
    %v563 = vunpack.c.h.b16 %v435
    %v564 = vpack.c.b16 %v502, %v500
    %v565 = vpack.c.b16 %v503, %v501
    %v566 = vpack.c.b16 %v506, %v504
    %v567 = vpack.c.b16 %v507, %v505
    %v568 = vpack.c.b16 %v510, %v508
    %v569 = vpack.c.b16 %v511, %v509
    %v570 = vpack.c.b16 %v514, %v512
    %v571 = vpack.c.b16 %v515, %v513
    %v572 = vpack.c.b16 %v518, %v516
    %v573 = vpack.c.b16 %v519, %v517
    %v574 = vpack.c.b16 %v522, %v520
    %v575 = vpack.c.b16 %v523, %v521
    %v576 = vpack.c.b16 %v526, %v524
    %v577 = vpack.c.b16 %v527, %v525
    %v578 = vpack.c.b16 %v530, %v528
    %v579 = vpack.c.b16 %v531, %v529
    %v580 = vpack.c.b16 %v534, %v532
    %v581 = vpack.c.b16 %v535, %v533
    %v582 = vpack.c.b16 %v538, %v536
    %v583 = vpack.c.b16 %v539, %v537
    %v584 = vpack.c.b16 %v542, %v540
    %v585 = vpack.c.b16 %v543, %v541
    %v586 = vpack.c.b16 %v546, %v544
    %v587 = vpack.c.b16 %v547, %v545
    %v588 = vpack.c.b16 %v550, %v548
    %v589 = vpack.c.b16 %v551, %v549
    %v590 = vpack.c.b16 %v554, %v552
    %v591 = vpack.c.b16 %v555, %v553
    %v592 = vpack.c.b16 %v558, %v556
    %v593 = vpack.c.b16 %v559, %v557
    %v594 = vpack.c.b16 %v562, %v560
    %v595 = vpack.c.b16 %v563, %v561
    %628 = vmatprep.subr.bf16.mxu0 %v565
    %629 = vmatpush1.bf16.msra.mxu0 %v564
    %630 = vmatprep.subr.bf16.mxu0 %v567
    %631 = vmatpush1.bf16.msra.mxu0 %v566
    %632 = vmatprep.subr.bf16.mxu0 %v569
    %633 = vmatpush1.bf16.msra.mxu0 %v568
    %634 = vmatprep.subr.bf16.mxu0 %v571
    %635 = vmatpush1.bf16.msra.mxu0 %v570
    %636 = vmatprep.subr.bf16.mxu0 %v573
    %637 = vmatpush1.bf16.msra.mxu0 %v572
    %638 = vmatprep.subr.bf16.mxu0 %v575
    %639 = vmatpush1.bf16.msra.mxu0 %v574
    %640 = vmatprep.subr.bf16.mxu0 %v577
    %641 = vmatpush1.bf16.msra.mxu0 %v576
    %642 = vmatprep.subr.bf16.mxu0 %v579
    %643 = vmatpush1.bf16.msra.mxu0 %v578
    %644 = vmatprep.subr.bf16.mxu0 %v581
    %645 = vmatpush1.bf16.msra.mxu0 %v580
    %646 = vmatprep.subr.bf16.mxu0 %v583
    %647 = vmatpush1.bf16.msra.mxu0 %v582
    %648 = vmatprep.subr.bf16.mxu0 %v585
    %649 = vmatpush1.bf16.msra.mxu0 %v584
    %650 = vmatprep.subr.bf16.mxu0 %v587
    %651 = vmatpush1.bf16.msra.mxu0 %v586
    %652 = vmatprep.subr.bf16.mxu0 %v589
    %653 = vmatpush1.bf16.msra.mxu0 %v588
    %654 = vmatprep.subr.bf16.mxu0 %v591
    %655 = vmatpush1.bf16.msra.mxu0 %v590
    %656 = vmatprep.subr.bf16.mxu0 %v593
    %657 = vmatpush1.bf16.msra.mxu0 %v592
    %658 = vmatprep.subr.bf16.mxu0 %v595
    %659 = vmatpush1.bf16.msra.mxu0 %v594
    %660 = vmatprep.mubr.bf16.mxu0 %v461
    %661 = vmatmul.mubr.bf16.gmra.mrb[0].mxu0 %v460
    %v662 = vpop.f32.mrb[0].mxu0
    %v663 = vadd.f32 %v441, %v662
    %v664 = vpop.f32.mrb[0].mxu0
    %v665 = vadd.f32 %v445, %v664
    %v666 = vpop.f32.mrb[0].mxu0
    %v667 = vadd.f32 %v441, %v666
    %v668 = vpop.f32.mrb[0].mxu0
    %v669 = vadd.f32 %v445, %v668
    %670 = vmatprep.mubr.bf16.mxu0 %v463
    %671 = vmatmul.mubr.bf16.gmra.mrb[0].mxu0 %v462
    %v672 = vpop.f32.mrb[0].mxu0
    %v673 = vadd.f32 %v441, %v672
    %v674 = vpop.f32.mrb[0].mxu0
    %v675 = vadd.f32 %v445, %v674
    %v676 = vpop.f32.mrb[0].mxu0
    %v677 = vadd.f32 %v441, %v676
    %v678 = vpop.f32.mrb[0].mxu0
    %v679 = vadd.f32 %v445, %v678
    %680 = vdwg.mxu0
    %v681 = vld [vmem:[#allocation7] sm:$0xff]
    %v682 = vld [vmem:[#allocation7 + $0x8] sm:$0xff]
    %v683 = vld [vmem:[#allocation7 + $0x10] sm:$0xff]
    %v684 = vld [vmem:[#allocation7 + $0x18] sm:$0xff]
    %v685 = vld [vmem:[#allocation11] sm:$0xff]
    %v686 = vld [vmem:[#allocation11 + $0x8] sm:$0xff]
    %v687 = vld [vmem:[#allocation11 + $0x10] sm:$0xff]
    %v688 = vld [vmem:[#allocation11 + $0x18] sm:$0xff]
    %v689 = vld [vmem:[#allocation11 + $0x20] sm:$0xff]
    %v690 = vld [vmem:[#allocation11 + $0x28] sm:$0xff]
    %v691 = vld [vmem:[#allocation11 + $0x30] sm:$0xff]
    %v692 = vld [vmem:[#allocation11 + $0x38] sm:$0xff]
    %v693 = vld [vmem:[#allocation11 + $0x40] sm:$0xff]
    %v694 = vld [vmem:[#allocation11 + $0x48] sm:$0xff]
    %v695 = vld [vmem:[#allocation11 + $0x50] sm:$0xff]
    %v696 = vld [vmem:[#allocation11 + $0x58] sm:$0xff]
    %v697 = vld [vmem:[#allocation11 + $0x60] sm:$0xff]
    %v698 = vld [vmem:[#allocation11 + $0x68] sm:$0xff]
    %v699 = vld [vmem:[#allocation11 + $0x70] sm:$0xff]
    %v700 = vld [vmem:[#allocation11 + $0x78] sm:$0xff]
    %v701 = vld [vmem:[#allocation11 + $0x80] sm:$0xff]
    %v702 = vld [vmem:[#allocation11 + $0x88] sm:$0xff]
    %v703 = vld [vmem:[#allocation11 + $0x90] sm:$0xff]
    %v704 = vld [vmem:[#allocation11 + $0x98] sm:$0xff]
    %v705 = vld [vmem:[#allocation11 + $0xa0] sm:$0xff]
    %v706 = vld [vmem:[#allocation11 + $0xa8] sm:$0xff]
    %v707 = vld [vmem:[#allocation11 + $0xb0] sm:$0xff]
    %v708 = vld [vmem:[#allocation11 + $0xb8] sm:$0xff]
    %v709 = vld [vmem:[#allocation11 + $0xc0] sm:$0xff]
    %v710 = vld [vmem:[#allocation11 + $0xc8] sm:$0xff]
    %v711 = vld [vmem:[#allocation11 + $0xd0] sm:$0xff]
    %v712 = vld [vmem:[#allocation11 + $0xd8] sm:$0xff]
    %v713 = vld [vmem:[#allocation11 + $0xe0] sm:$0xff]
    %v714 = vld [vmem:[#allocation11 + $0xe8] sm:$0xff]
    %v715 = vld [vmem:[#allocation11 + $0xf0] sm:$0xff]
    %v716 = vld [vmem:[#allocation11 + $0xf8] sm:$0xff]
    %v717 = vld [vmem:[%s8] sm:$0x3]
    %v719 = vlaneseq
    %v720 = vshrl.u32 %v719, 7
    %v721 = vsub.s32 0, %v720
    %v722 = vrot.slane %v717, %v721
    %v723 = vlaneseq
    %v724 = vshrl.u32 %v723, 7
    %v725 = vsub.s32 1, %v724
    %v726 = vrot.slane %v717, %v725
    %v733 = vunpack.c.l.b16 %v681
    %v734 = vunpack.c.h.b16 %v681
    %v735 = vunpack.c.l.b16 %v682
    %v736 = vunpack.c.h.b16 %v682
    %v737 = vunpack.c.l.b16 %v683
    %v738 = vunpack.c.h.b16 %v683
    %v739 = vunpack.c.l.b16 %v684
    %v740 = vunpack.c.h.b16 %v684
    %v741 = vpack.c.b16 %v735, %v733
    %v742 = vpack.c.b16 %v736, %v734
    %v743 = vpack.c.b16 %v739, %v737
    %v744 = vpack.c.b16 %v740, %v738
    %v781 = vunpack.c.l.b16 %v685
    %v782 = vunpack.c.h.b16 %v685
    %v783 = vunpack.c.l.b16 %v686
    %v784 = vunpack.c.h.b16 %v686
    %v785 = vunpack.c.l.b16 %v687
    %v786 = vunpack.c.h.b16 %v687
    %v787 = vunpack.c.l.b16 %v688
    %v788 = vunpack.c.h.b16 %v688
    %v789 = vunpack.c.l.b16 %v689
    %v790 = vunpack.c.h.b16 %v689
    %v791 = vunpack.c.l.b16 %v690
    %v792 = vunpack.c.h.b16 %v690
    %v793 = vunpack.c.l.b16 %v691
    %v794 = vunpack.c.h.b16 %v691
    %v795 = vunpack.c.l.b16 %v692
    %v796 = vunpack.c.h.b16 %v692
    %v797 = vunpack.c.l.b16 %v693
    %v798 = vunpack.c.h.b16 %v693
    %v799 = vunpack.c.l.b16 %v694
    %v800 = vunpack.c.h.b16 %v694
    %v801 = vunpack.c.l.b16 %v695
    %v802 = vunpack.c.h.b16 %v695
    %v803 = vunpack.c.l.b16 %v696
    %v804 = vunpack.c.h.b16 %v696
    %v805 = vunpack.c.l.b16 %v697
    %v806 = vunpack.c.h.b16 %v697
    %v807 = vunpack.c.l.b16 %v698
    %v808 = vunpack.c.h.b16 %v698
    %v809 = vunpack.c.l.b16 %v699
    %v810 = vunpack.c.h.b16 %v699
    %v811 = vunpack.c.l.b16 %v700
    %v812 = vunpack.c.h.b16 %v700
    %v813 = vunpack.c.l.b16 %v701
    %v814 = vunpack.c.h.b16 %v701
    %v815 = vunpack.c.l.b16 %v702
    %v816 = vunpack.c.h.b16 %v702
    %v817 = vunpack.c.l.b16 %v703
    %v818 = vunpack.c.h.b16 %v703
    %v819 = vunpack.c.l.b16 %v704
    %v820 = vunpack.c.h.b16 %v704
    %v821 = vunpack.c.l.b16 %v705
    %v822 = vunpack.c.h.b16 %v705
    %v823 = vunpack.c.l.b16 %v706
    %v824 = vunpack.c.h.b16 %v706
    %v825 = vunpack.c.l.b16 %v707
    %v826 = vunpack.c.h.b16 %v707
    %v827 = vunpack.c.l.b16 %v708
    %v828 = vunpack.c.h.b16 %v708
    %v829 = vunpack.c.l.b16 %v709
    %v830 = vunpack.c.h.b16 %v709
    %v831 = vunpack.c.l.b16 %v710
    %v832 = vunpack.c.h.b16 %v710
    %v833 = vunpack.c.l.b16 %v711
    %v834 = vunpack.c.h.b16 %v711
    %v835 = vunpack.c.l.b16 %v712
    %v836 = vunpack.c.h.b16 %v712
    %v837 = vunpack.c.l.b16 %v713
    %v838 = vunpack.c.h.b16 %v713
    %v839 = vunpack.c.l.b16 %v714
    %v840 = vunpack.c.h.b16 %v714
    %v841 = vunpack.c.l.b16 %v715
    %v842 = vunpack.c.h.b16 %v715
    %v843 = vunpack.c.l.b16 %v716
    %v844 = vunpack.c.h.b16 %v716
    %v845 = vpack.c.b16 %v783, %v781
    %v846 = vpack.c.b16 %v784, %v782
    %v847 = vpack.c.b16 %v787, %v785
    %v848 = vpack.c.b16 %v788, %v786
    %v849 = vpack.c.b16 %v791, %v789
    %v850 = vpack.c.b16 %v792, %v790
    %v851 = vpack.c.b16 %v795, %v793
    %v852 = vpack.c.b16 %v796, %v794
    %v853 = vpack.c.b16 %v799, %v797
    %v854 = vpack.c.b16 %v800, %v798
    %v855 = vpack.c.b16 %v803, %v801
    %v856 = vpack.c.b16 %v804, %v802
    %v857 = vpack.c.b16 %v807, %v805
    %v858 = vpack.c.b16 %v808, %v806
    %v859 = vpack.c.b16 %v811, %v809
    %v860 = vpack.c.b16 %v812, %v810
    %v861 = vpack.c.b16 %v815, %v813
    %v862 = vpack.c.b16 %v816, %v814
    %v863 = vpack.c.b16 %v819, %v817
    %v864 = vpack.c.b16 %v820, %v818
    %v865 = vpack.c.b16 %v823, %v821
    %v866 = vpack.c.b16 %v824, %v822
    %v867 = vpack.c.b16 %v827, %v825
    %v868 = vpack.c.b16 %v828, %v826
    %v869 = vpack.c.b16 %v831, %v829
    %v870 = vpack.c.b16 %v832, %v830
    %v871 = vpack.c.b16 %v835, %v833
    %v872 = vpack.c.b16 %v836, %v834
    %v873 = vpack.c.b16 %v839, %v837
    %v874 = vpack.c.b16 %v840, %v838
    %v875 = vpack.c.b16 %v843, %v841
    %v876 = vpack.c.b16 %v844, %v842
    %909 = vmatprep.subr.bf16.mxu0 %v846
    %910 = vmatpush1.bf16.msra.mxu0 %v845
    %911 = vmatprep.subr.bf16.mxu0 %v848
    %912 = vmatpush1.bf16.msra.mxu0 %v847
    %913 = vmatprep.subr.bf16.mxu0 %v850
    %914 = vmatpush1.bf16.msra.mxu0 %v849
    %915 = vmatprep.subr.bf16.mxu0 %v852
    %916 = vmatpush1.bf16.msra.mxu0 %v851
    %917 = vmatprep.subr.bf16.mxu0 %v854
    %918 = vmatpush1.bf16.msra.mxu0 %v853
    %919 = vmatprep.subr.bf16.mxu0 %v856
    %920 = vmatpush1.bf16.msra.mxu0 %v855
    %921 = vmatprep.subr.bf16.mxu0 %v858
    %922 = vmatpush1.bf16.msra.mxu0 %v857
    %923 = vmatprep.subr.bf16.mxu0 %v860
    %924 = vmatpush1.bf16.msra.mxu0 %v859
    %925 = vmatprep.subr.bf16.mxu0 %v862
    %926 = vmatpush1.bf16.msra.mxu0 %v861
    %927 = vmatprep.subr.bf16.mxu0 %v864
    %928 = vmatpush1.bf16.msra.mxu0 %v863
    %929 = vmatprep.subr.bf16.mxu0 %v866
    %930 = vmatpush1.bf16.msra.mxu0 %v865
    %931 = vmatprep.subr.bf16.mxu0 %v868
    %932 = vmatpush1.bf16.msra.mxu0 %v867
    %933 = vmatprep.subr.bf16.mxu0 %v870
    %934 = vmatpush1.bf16.msra.mxu0 %v869
    %935 = vmatprep.subr.bf16.mxu0 %v872
    %936 = vmatpush1.bf16.msra.mxu0 %v871
    %937 = vmatprep.subr.bf16.mxu0 %v874
    %938 = vmatpush1.bf16.msra.mxu0 %v873
    %939 = vmatprep.subr.bf16.mxu0 %v876
    %940 = vmatpush1.bf16.msra.mxu0 %v875
    %941 = vmatprep.mubr.bf16.mxu0 %v742
    %942 = vmatmul.mubr.bf16.gmra.mrb[0].mxu0 %v741
    %v943 = vpop.f32.mrb[0].mxu0
    %v944 = vadd.f32 %v722, %v943
    %v945 = vpop.f32.mrb[0].mxu0
    %v946 = vadd.f32 %v726, %v945
    %v947 = vpop.f32.mrb[0].mxu0
    %v948 = vadd.f32 %v722, %v947
    %v949 = vpop.f32.mrb[0].mxu0
    %v950 = vadd.f32 %v726, %v949
    %951 = vmatprep.mubr.bf16.mxu0 %v744
    %952 = vmatmul.mubr.bf16.gmra.mrb[0].mxu0 %v743
    %v953 = vpop.f32.mrb[0].mxu0
    %v954 = vadd.f32 %v722, %v953
    %v955 = vpop.f32.mrb[0].mxu0
    %v956 = vadd.f32 %v726, %v955
    %v957 = vpop.f32.mrb[0].mxu0
    %v958 = vadd.f32 %v722, %v957
    %v959 = vpop.f32.mrb[0].mxu0
    %v960 = vadd.f32 %v726, %v959
    %961 = vdwg.mxu0
    %v962 = vpack.c.bf16 %v382, %v382
    %v963 = vpack.c.bf16 %v384, %v384
    %v964 = vpack.c.bf16 %v386, %v386
    %v965 = vpack.c.bf16 %v388, %v388
    %v966 = vpack.c.bf16 %v392, %v392
    %v967 = vpack.c.bf16 %v394, %v394
    %v968 = vpack.c.bf16 %v396, %v396
    %v969 = vpack.c.bf16 %v398, %v398
    %v970 = vpack.c.bf16 %v663, %v663
    %v971 = vpack.c.bf16 %v665, %v665
    %v972 = vpack.c.bf16 %v667, %v667
    %v973 = vpack.c.bf16 %v669, %v669
    %v974 = vpack.c.bf16 %v673, %v673
    %v975 = vpack.c.bf16 %v675, %v675
    %v976 = vpack.c.bf16 %v677, %v677
    %v977 = vpack.c.bf16 %v679, %v679
    %v978 = vpack.c.bf16 %v944, %v944
    %v979 = vpack.c.bf16 %v946, %v946
    %v980 = vpack.c.bf16 %v948, %v948
    %v981 = vpack.c.bf16 %v950, %v950
    %v982 = vpack.c.bf16 %v954, %v954
    %v983 = vpack.c.bf16 %v956, %v956
    %v984 = vpack.c.bf16 %v958, %v958
    %v985 = vpack.c.bf16 %v960, %v960
    %986 = vmatprep.subr.bf16.mxu0 %v971
    %987 = vmatpush1.bf16.xpose.msra.mxu0 %v970
    %988 = vmatprep.subr.bf16.mxu0 0
    %989 = vmatpush1.bf16.xpose.msra.mxu0 0
    %990 = vmatprep.subr.bf16.mxu0 0
    %991 = vmatpush1.bf16.xpose.msra.mxu0 0
    %992 = vmatprep.subr.bf16.mxu0 0
    %993 = vmatpush1.bf16.xpose.msra.mxu0 0
    %994 = vmatprep.subr.bf16.mxu0 0
    %995 = vmatpush1.bf16.xpose.msra.mxu0 0
    %996 = vmatprep.subr.bf16.mxu0 0
    %997 = vmatpush1.bf16.xpose.msra.mxu0 0
    %998 = vmatprep.subr.bf16.mxu0 0
    %999 = vmatpush1.bf16.xpose.msra.mxu0 0
    %1000 = vmatprep.subr.bf16.mxu0 0
    %1001 = vmatpush1.bf16.xpose.msra.mxu0 0
    %1002 = vmatprep.subr.bf16.mxu0 0
    %1003 = vmatpush1.bf16.xpose.msra.mxu0 0
    %1004 = vmatprep.subr.bf16.mxu0 0
    %1005 = vmatpush1.bf16.xpose.msra.mxu0 0
    %1006 = vmatprep.subr.bf16.mxu0 0
    %1007 = vmatpush1.bf16.xpose.msra.mxu0 0
    %1008 = vmatprep.subr.bf16.mxu0 0
    %1009 = vmatpush1.bf16.xpose.msra.mxu0 0
    %1010 = vmatprep.subr.bf16.mxu0 0
    %1011 = vmatpush1.bf16.xpose.msra.mxu0 0
    %1012 = vmatprep.subr.bf16.mxu0 0
    %1013 = vmatpush1.bf16.xpose.msra.mxu0 0
    %1014 = vmatprep.subr.bf16.mxu0 0
    %1015 = vmatpush1.bf16.xpose.msra.mxu0 0
    %1016 = vmatprep.subr.bf16.mxu0 0
    %1017 = vmatpush1.bf16.xpose.msra.mxu0 0
    %1018 = vmatprep.mubr.bf16.mxu0 %v963
    %1019 = vmatmul.mubr.bf16.gmra.mrb[0].mxu0 %v962
    %v1020 = vpop.f32.mrb[0].mxu0
    %v1021 = vadd.f32 0.0, %v1020
    %v1022 = vpop.f32.mrb[0].mxu0
    %v1023 = vpop.f32.mrb[0].mxu0
    %v1024 = vpop.f32.mrb[0].mxu0
    %1025 = vdwg.mxu0
    %1026 = vmatprep.subr.bf16.mxu0 %v973
    %1027 = vmatpush1.bf16.xpose.msra.mxu0 %v972
    %1028 = vmatprep.subr.bf16.mxu0 0
    %1029 = vmatpush1.bf16.xpose.msra.mxu0 0
    %1030 = vmatprep.subr.bf16.mxu0 0
    %1031 = vmatpush1.bf16.xpose.msra.mxu0 0
    %1032 = vmatprep.subr.bf16.mxu0 0
    %1033 = vmatpush1.bf16.xpose.msra.mxu0 0
    %1034 = vmatprep.subr.bf16.mxu0 0
    %1035 = vmatpush1.bf16.xpose.msra.mxu0 0
    %1036 = vmatprep.subr.bf16.mxu0 0
    %1037 = vmatpush1.bf16.xpose.msra.mxu0 0
    %1038 = vmatprep.subr.bf16.mxu0 0
    %1039 = vmatpush1.bf16.xpose.msra.mxu0 0
    %1040 = vmatprep.subr.bf16.mxu0 0
    %1041 = vmatpush1.bf16.xpose.msra.mxu0 0
    %1042 = vmatprep.subr.bf16.mxu0 0
    %1043 = vmatpush1.bf16.xpose.msra.mxu0 0
    %1044 = vmatprep.subr.bf16.mxu0 0
    %1045 = vmatpush1.bf16.xpose.msra.mxu0 0
    %1046 = vmatprep.subr.bf16.mxu0 0
    %1047 = vmatpush1.bf16.xpose.msra.mxu0 0
    %1048 = vmatprep.subr.bf16.mxu0 0
    %1049 = vmatpush1.bf16.xpose.msra.mxu0 0
    %1050 = vmatprep.subr.bf16.mxu0 0
    %1051 = vmatpush1.bf16.xpose.msra.mxu0 0
    %1052 = vmatprep.subr.bf16.mxu0 0
    %1053 = vmatpush1.bf16.xpose.msra.mxu0 0
    %1054 = vmatprep.subr.bf16.mxu0 0
    %1055 = vmatpush1.bf16.xpose.msra.mxu0 0
    %1056 = vmatprep.subr.bf16.mxu0 0
    %1057 = vmatpush1.bf16.xpose.msra.mxu0 0
    %1058 = vmatprep.mubr.bf16.mxu0 %v965
    %1059 = vmatmul.mubr.bf16.gmra.mrb[0].mxu0 %v964
    %v1060 = vpop.f32.mrb[0].mxu0
    %v1061 = vadd.f32 0.0, %v1060
    %v1062 = vpop.f32.mrb[0].mxu0
    %v1063 = vpop.f32.mrb[0].mxu0
    %v1064 = vpop.f32.mrb[0].mxu0
    %1065 = vdwg.mxu0
    %1066 = vmatprep.subr.bf16.mxu0 %v975
    %1067 = vmatpush1.bf16.xpose.msra.mxu0 %v974
    %1068 = vmatprep.subr.bf16.mxu0 0
    %1069 = vmatpush1.bf16.xpose.msra.mxu0 0
    %1070 = vmatprep.subr.bf16.mxu0 0
    %1071 = vmatpush1.bf16.xpose.msra.mxu0 0
    %1072 = vmatprep.subr.bf16.mxu0 0
    %1073 = vmatpush1.bf16.xpose.msra.mxu0 0
    %1074 = vmatprep.subr.bf16.mxu0 0
    %1075 = vmatpush1.bf16.xpose.msra.mxu0 0
    %1076 = vmatprep.subr.bf16.mxu0 0
    %1077 = vmatpush1.bf16.xpose.msra.mxu0 0
    %1078 = vmatprep.subr.bf16.mxu0 0
    %1079 = vmatpush1.bf16.xpose.msra.mxu0 0
    %1080 = vmatprep.subr.bf16.mxu0 0
    %1081 = vmatpush1.bf16.xpose.msra.mxu0 0
    %1082 = vmatprep.subr.bf16.mxu0 0
    %1083 = vmatpush1.bf16.xpose.msra.mxu0 0
    %1084 = vmatprep.subr.bf16.mxu0 0
    %1085 = vmatpush1.bf16.xpose.msra.mxu0 0
    %1086 = vmatprep.subr.bf16.mxu0 0
    %1087 = vmatpush1.bf16.xpose.msra.mxu0 0
    %1088 = vmatprep.subr.bf16.mxu0 0
    %1089 = vmatpush1.bf16.xpose.msra.mxu0 0
    %1090 = vmatprep.subr.bf16.mxu0 0
    %1091 = vmatpush1.bf16.xpose.msra.mxu0 0
    %1092 = vmatprep.subr.bf16.mxu0 0
    %1093 = vmatpush1.bf16.xpose.msra.mxu0 0
    %1094 = vmatprep.subr.bf16.mxu0 0
    %1095 = vmatpush1.bf16.xpose.msra.mxu0 0
    %1096 = vmatprep.subr.bf16.mxu0 0
    %1097 = vmatpush1.bf16.xpose.msra.mxu0 0
    %1098 = vmatprep.mubr.bf16.mxu0 %v967
    %1099 = vmatmul.mubr.bf16.gmra.mrb[0].mxu0 %v966
    %v1100 = vpop.f32.mrb[0].mxu0
    %v1101 = vadd.f32 0.0, %v1100
    %v1102 = vpop.f32.mrb[0].mxu0
    %v1103 = vpop.f32.mrb[0].mxu0
    %v1104 = vpop.f32.mrb[0].mxu0
    %1105 = vdwg.mxu0
    %1106 = vmatprep.subr.bf16.mxu0 %v977
    %1107 = vmatpush1.bf16.xpose.msra.mxu0 %v976
    %1108 = vmatprep.subr.bf16.mxu0 0
    %1109 = vmatpush1.bf16.xpose.msra.mxu0 0
    %1110 = vmatprep.subr.bf16.mxu0 0
    %1111 = vmatpush1.bf16.xpose.msra.mxu0 0
    %1112 = vmatprep.subr.bf16.mxu0 0
    %1113 = vmatpush1.bf16.xpose.msra.mxu0 0
    %1114 = vmatprep.subr.bf16.mxu0 0
    %1115 = vmatpush1.bf16.xpose.msra.mxu0 0
    %1116 = vmatprep.subr.bf16.mxu0 0
    %1117 = vmatpush1.bf16.xpose.msra.mxu0 0
    %1118 = vmatprep.subr.bf16.mxu0 0
    %1119 = vmatpush1.bf16.xpose.msra.mxu0 0
    %1120 = vmatprep.subr.bf16.mxu0 0
    %1121 = vmatpush1.bf16.xpose.msra.mxu0 0
    %1122 = vmatprep.subr.bf16.mxu0 0
    %1123 = vmatpush1.bf16.xpose.msra.mxu0 0
    %1124 = vmatprep.subr.bf16.mxu0 0
    %1125 = vmatpush1.bf16.xpose.msra.mxu0 0
    %1126 = vmatprep.subr.bf16.mxu0 0
    %1127 = vmatpush1.bf16.xpose.msra.mxu0 0
    %1128 = vmatprep.subr.bf16.mxu0 0
    %1129 = vmatpush1.bf16.xpose.msra.mxu0 0
    %1130 = vmatprep.subr.bf16.mxu0 0
    %1131 = vmatpush1.bf16.xpose.msra.mxu0 0
    %1132 = vmatprep.subr.bf16.mxu0 0
    %1133 = vmatpush1.bf16.xpose.msra.mxu0 0
    %1134 = vmatprep.subr.bf16.mxu0 0
    %1135 = vmatpush1.bf16.xpose.msra.mxu0 0
    %1136 = vmatprep.subr.bf16.mxu0 0
    %1137 = vmatpush1.bf16.xpose.msra.mxu0 0
    %1138 = vmatprep.mubr.bf16.mxu0 %v969
    %1139 = vmatmul.mubr.bf16.gmra.mrb[0].mxu0 %v968
    %v1140 = vpop.f32.mrb[0].mxu0
    %v1141 = vadd.f32 0.0, %v1140
    %v1142 = vpop.f32.mrb[0].mxu0
    %v1143 = vpop.f32.mrb[0].mxu0
    %v1144 = vpop.f32.mrb[0].mxu0
    %1145 = vdwg.mxu0
    %vm1146 = vcmask 64512
    %v1147 = vsel %vm1146, %v1021, -inf
    %1148 = vmax.xlane.f32.xlu0 %v1147
    %v1149 = vpop.xlane.xlu0 %1148
    %v1150 = vsel %vm1146, %v1061, -inf
    %1151 = vmax.xlane.f32.xlu0 %v1150
    %v1152 = vpop.xlane.xlu0 %1151
    %v1153 = vsel %vm1146, %v1101, -inf
    %1154 = vmax.xlane.f32.xlu0 %v1153
    %v1155 = vpop.xlane.xlu0 %1154
    %v1156 = vsel %vm1146, %v1141, -inf
    %1157 = vmax.xlane.f32.xlu0 %v1156
    %v1158 = vpop.xlane.xlu0 %1157
    %v1159 = vsub.f32 %v1021, %v1149
    %v1160 = vsub.f32 %v1061, %v1152
    %v1161 = vsub.f32 %v1101, %v1155
    %v1162 = vsub.f32 %v1141, %v1158
    %v1163 = vmul.f32 %v1159, 1.442695
    %v1164 = vpow.pop %v1163
    %v1165 = vmul.f32 %v1160, 1.442695
    %v1166 = vpow.pop %v1165
    %v1167 = vmul.f32 %v1161, 1.442695
    %v1168 = vpow.pop %v1167
    %v1169 = vmul.f32 %v1162, 1.442695
    %v1170 = vpow.pop %v1169
    %v1171 = vsel %vm1146, %v1164, 0.0
    %1172 = vadd.xlane.f32.xlu0 %v1171
    %v1173 = vpop.xlane.xlu0 %1172
    %v1174 = vsel %vm1146, %v1166, 0.0
    %1175 = vadd.xlane.f32.xlu0 %v1174
    %v1176 = vpop.xlane.xlu0 %1175
    %v1177 = vsel %vm1146, %v1168, 0.0
    %1178 = vadd.xlane.f32.xlu0 %v1177
    %v1179 = vpop.xlane.xlu0 %1178
    %v1180 = vsel %vm1146, %v1170, 0.0
    %1181 = vadd.xlane.f32.xlu0 %v1180
    %v1182 = vpop.xlane.xlu0 %1181
    %v1183 = vrcp.pop %v1173
    %v1184 = vmul.f32 1.0, %v1183
    %v1185 = vrcp.pop %v1176
    %v1186 = vmul.f32 1.0, %v1185
    %v1187 = vrcp.pop %v1179
    %v1188 = vmul.f32 1.0, %v1187
    %v1189 = vrcp.pop %v1182
    %v1190 = vmul.f32 1.0, %v1189
    %v1191 = vmul.f32 %v1164, %v1184
    %v1192 = vmul.f32 %v1166, %v1186
    %v1193 = vmul.f32 %v1168, %v1188
    %v1194 = vmul.f32 %v1170, %v1190
    %v1195 = vpack.c.bf16 %v1191, %v1191
    %v1196 = vpack.c.bf16 %v1192, %v1192
    %v1197 = vpack.c.bf16 %v1193, %v1193
    %v1198 = vpack.c.bf16 %v1194, %v1194
    %v1200 = vsel %vm1146, %v1195, 0
    %vm1202 = vcmask 1043456
    %v1204 = vsel %vm1202, %v978, 0
    %v1207 = vsel %vm1202, %v979, 0
    %1209 = vmatprep.subr.bf16.mxu0 %v1207
    %1210 = vmatpush1.bf16.msra.mxu0 %v1204
    %1211 = vmatprep.subr.bf16.mxu0 0
    %1212 = vmatpush1.bf16.msra.mxu0 0
    %1213 = vmatprep.subr.bf16.mxu0 0
    %1214 = vmatpush1.bf16.msra.mxu0 0
    %1215 = vmatprep.subr.bf16.mxu0 0
    %1216 = vmatpush1.bf16.msra.mxu0 0
    %1217 = vmatprep.subr.bf16.mxu0 0
    %1218 = vmatpush1.bf16.msra.mxu0 0
    %1219 = vmatprep.subr.bf16.mxu0 0
    %1220 = vmatpush1.bf16.msra.mxu0 0
    %1221 = vmatprep.subr.bf16.mxu0 0
    %1222 = vmatpush1.bf16.msra.mxu0 0
    %1223 = vmatprep.subr.bf16.mxu0 0
    %1224 = vmatpush1.bf16.msra.mxu0 0
    %1225 = vmatprep.subr.bf16.mxu0 0
    %1226 = vmatpush1.bf16.msra.mxu0 0
    %1227 = vmatprep.subr.bf16.mxu0 0
    %1228 = vmatpush1.bf16.msra.mxu0 0
    %1229 = vmatprep.subr.bf16.mxu0 0
    %1230 = vmatpush1.bf16.msra.mxu0 0
    %1231 = vmatprep.subr.bf16.mxu0 0
    %1232 = vmatpush1.bf16.msra.mxu0 0
    %1233 = vmatprep.subr.bf16.mxu0 0
    %1234 = vmatpush1.bf16.msra.mxu0 0
    %1235 = vmatprep.subr.bf16.mxu0 0
    %1236 = vmatpush1.bf16.msra.mxu0 0
    %1237 = vmatprep.subr.bf16.mxu0 0
    %1238 = vmatpush1.bf16.msra.mxu0 0
    %1239 = vmatprep.subr.bf16.mxu0 0
    %1240 = vmatpush1.bf16.msra.mxu0 0
    %1241 = vmatprep.mubr.bf16.mxu0 0
    %1242 = vmatmul.mubr.bf16.gmra.mrb[0].mxu0 %v1200
    %v1243 = vpop.f32.mrb[0].mxu0
    %v1244 = vadd.f32 0.0, %v1243
    %v1245 = vpop.f32.mrb[0].mxu0
    %v1246 = vadd.f32 0.0, %v1245
    %v1247 = vpop.f32.mrb[0].mxu0
    %v1248 = vpop.f32.mrb[0].mxu0
    %1249 = vdwg.mxu0
    %v1251 = vsel %vm1146, %v1196, 0
    %v1254 = vsel %vm1202, %v980, 0
    %v1257 = vsel %vm1202, %v981, 0
    %1259 = vmatprep.subr.bf16.mxu0 %v1257
    %1260 = vmatpush1.bf16.msra.mxu0 %v1254
    %1261 = vmatprep.subr.bf16.mxu0 0
    %1262 = vmatpush1.bf16.msra.mxu0 0
    %1263 = vmatprep.subr.bf16.mxu0 0
    %1264 = vmatpush1.bf16.msra.mxu0 0
    %1265 = vmatprep.subr.bf16.mxu0 0
    %1266 = vmatpush1.bf16.msra.mxu0 0
    %1267 = vmatprep.subr.bf16.mxu0 0
    %1268 = vmatpush1.bf16.msra.mxu0 0
    %1269 = vmatprep.subr.bf16.mxu0 0
    %1270 = vmatpush1.bf16.msra.mxu0 0
    %1271 = vmatprep.subr.bf16.mxu0 0
    %1272 = vmatpush1.bf16.msra.mxu0 0
    %1273 = vmatprep.subr.bf16.mxu0 0
    %1274 = vmatpush1.bf16.msra.mxu0 0
    %1275 = vmatprep.subr.bf16.mxu0 0
    %1276 = vmatpush1.bf16.msra.mxu0 0
    %1277 = vmatprep.subr.bf16.mxu0 0
    %1278 = vmatpush1.bf16.msra.mxu0 0
    %1279 = vmatprep.subr.bf16.mxu0 0
    %1280 = vmatpush1.bf16.msra.mxu0 0
    %1281 = vmatprep.subr.bf16.mxu0 0
    %1282 = vmatpush1.bf16.msra.mxu0 0
    %1283 = vmatprep.subr.bf16.mxu0 0
    %1284 = vmatpush1.bf16.msra.mxu0 0
    %1285 = vmatprep.subr.bf16.mxu0 0
    %1286 = vmatpush1.bf16.msra.mxu0 0
    %1287 = vmatprep.subr.bf16.mxu0 0
    %1288 = vmatpush1.bf16.msra.mxu0 0
    %1289 = vmatprep.subr.bf16.mxu0 0
    %1290 = vmatpush1.bf16.msra.mxu0 0
    %1291 = vmatprep.mubr.bf16.mxu0 0
    %1292 = vmatmul.mubr.bf16.gmra.mrb[0].mxu0 %v1251
    %v1293 = vpop.f32.mrb[0].mxu0
    %v1294 = vadd.f32 0.0, %v1293
    %v1295 = vpop.f32.mrb[0].mxu0
    %v1296 = vadd.f32 0.0, %v1295
    %v1297 = vpop.f32.mrb[0].mxu0
    %v1298 = vpop.f32.mrb[0].mxu0
    %1299 = vdwg.mxu0
    %v1301 = vsel %vm1146, %v1197, 0
    %v1304 = vsel %vm1202, %v982, 0
    %v1307 = vsel %vm1202, %v983, 0
    %1309 = vmatprep.subr.bf16.mxu0 %v1307
    %1310 = vmatpush1.bf16.msra.mxu0 %v1304
    %1311 = vmatprep.subr.bf16.mxu0 0
    %1312 = vmatpush1.bf16.msra.mxu0 0
    %1313 = vmatprep.subr.bf16.mxu0 0
    %1314 = vmatpush1.bf16.msra.mxu0 0
    %1315 = vmatprep.subr.bf16.mxu0 0
    %1316 = vmatpush1.bf16.msra.mxu0 0
    %1317 = vmatprep.subr.bf16.mxu0 0
    %1318 = vmatpush1.bf16.msra.mxu0 0
    %1319 = vmatprep.subr.bf16.mxu0 0
    %1320 = vmatpush1.bf16.msra.mxu0 0
    %1321 = vmatprep.subr.bf16.mxu0 0
    %1322 = vmatpush1.bf16.msra.mxu0 0
    %1323 = vmatprep.subr.bf16.mxu0 0
    %1324 = vmatpush1.bf16.msra.mxu0 0
    %1325 = vmatprep.subr.bf16.mxu0 0
    %1326 = vmatpush1.bf16.msra.mxu0 0
    %1327 = vmatprep.subr.bf16.mxu0 0
    %1328 = vmatpush1.bf16.msra.mxu0 0
    %1329 = vmatprep.subr.bf16.mxu0 0
    %1330 = vmatpush1.bf16.msra.mxu0 0
    %1331 = vmatprep.subr.bf16.mxu0 0
    %1332 = vmatpush1.bf16.msra.mxu0 0
    %1333 = vmatprep.subr.bf16.mxu0 0
    %1334 = vmatpush1.bf16.msra.mxu0 0
    %1335 = vmatprep.subr.bf16.mxu0 0
    %1336 = vmatpush1.bf16.msra.mxu0 0
    %1337 = vmatprep.subr.bf16.mxu0 0
    %1338 = vmatpush1.bf16.msra.mxu0 0
    %1339 = vmatprep.subr.bf16.mxu0 0
    %1340 = vmatpush1.bf16.msra.mxu0 0
    %1341 = vmatprep.mubr.bf16.mxu0 0
    %1342 = vmatmul.mubr.bf16.gmra.mrb[0].mxu0 %v1301
    %v1343 = vpop.f32.mrb[0].mxu0
    %v1344 = vadd.f32 0.0, %v1343
    %v1345 = vpop.f32.mrb[0].mxu0
    %v1346 = vadd.f32 0.0, %v1345
    %v1347 = vpop.f32.mrb[0].mxu0
    %v1348 = vpop.f32.mrb[0].mxu0
    %1349 = vdwg.mxu0
    %v1351 = vsel %vm1146, %v1198, 0
    %v1354 = vsel %vm1202, %v984, 0
    %v1357 = vsel %vm1202, %v985, 0
    %1359 = vmatprep.subr.bf16.mxu0 %v1357
    %1360 = vmatpush1.bf16.msra.mxu0 %v1354
    %1361 = vmatprep.subr.bf16.mxu0 0
    %1362 = vmatpush1.bf16.msra.mxu0 0
    %1363 = vmatprep.subr.bf16.mxu0 0
    %1364 = vmatpush1.bf16.msra.mxu0 0
    %1365 = vmatprep.subr.bf16.mxu0 0
    %1366 = vmatpush1.bf16.msra.mxu0 0
    %1367 = vmatprep.subr.bf16.mxu0 0
    %1368 = vmatpush1.bf16.msra.mxu0 0
    %1369 = vmatprep.subr.bf16.mxu0 0
    %1370 = vmatpush1.bf16.msra.mxu0 0
    %1371 = vmatprep.subr.bf16.mxu0 0
    %1372 = vmatpush1.bf16.msra.mxu0 0
    %1373 = vmatprep.subr.bf16.mxu0 0
    %1374 = vmatpush1.bf16.msra.mxu0 0
    %1375 = vmatprep.subr.bf16.mxu0 0
    %1376 = vmatpush1.bf16.msra.mxu0 0
    %1377 = vmatprep.subr.bf16.mxu0 0
    %1378 = vmatpush1.bf16.msra.mxu0 0
    %1379 = vmatprep.subr.bf16.mxu0 0
    %1380 = vmatpush1.bf16.msra.mxu0 0
    %1381 = vmatprep.subr.bf16.mxu0 0
    %1382 = vmatpush1.bf16.msra.mxu0 0
    %1383 = vmatprep.subr.bf16.mxu0 0
    %1384 = vmatpush1.bf16.msra.mxu0 0
    %1385 = vmatprep.subr.bf16.mxu0 0
    %1386 = vmatpush1.bf16.msra.mxu0 0
    %1387 = vmatprep.subr.bf16.mxu0 0
    %1388 = vmatpush1.bf16.msra.mxu0 0
    %1389 = vmatprep.subr.bf16.mxu0 0
    %1390 = vmatpush1.bf16.msra.mxu0 0
    %1391 = vmatprep.mubr.bf16.mxu0 0
    %1392 = vmatmul.mubr.bf16.gmra.mrb[0].mxu0 %v1351
    %v1393 = vpop.f32.mrb[0].mxu0
    %v1394 = vadd.f32 0.0, %v1393
    %v1395 = vpop.f32.mrb[0].mxu0
    %v1396 = vadd.f32 0.0, %v1395
    %v1397 = vpop.f32.mrb[0].mxu0
    %v1398 = vpop.f32.mrb[0].mxu0
    %1399 = vdwg.mxu0
    %1400 = vst [vmem:[#allocation13] sm:$0xff] %v1244
    %1401 = vst [vmem:[#allocation13 + $0x8] sm:$0xff] %v1246
    %1402 = vst [vmem:[#allocation13 + $0x10] sm:$0xff] %v1294
    %1403 = vst [vmem:[#allocation13 + $0x18] sm:$0xff] %v1296
    %1404 = vst [vmem:[#allocation13 + $0x20] sm:$0xff] %v1344
    %1405 = vst [vmem:[#allocation13 + $0x28] sm:$0xff] %v1346
    %1406 = vst [vmem:[#allocation13 + $0x30] sm:$0xff] %v1394
    %1407 = vst [vmem:[#allocation13 + $0x38] sm:$0xff] %v1396
    %1408 = vst.msk [vmem:[#allocation14] sm:$0xff] %vm1146, %v1191
    %1409 = vst.msk [vmem:[#allocation14 + $0x8] sm:$0xff] %vm1146, %v1192
    %1410 = vst.msk [vmem:[#allocation14 + $0x10] sm:$0xff] %vm1146, %v1193
    %1411 = vst.msk [vmem:[#allocation14 + $0x18] sm:$0xff] %vm1146, %v1194
    // Predicated region
    $region62: #{tpu_custom_call.1} parent=1 // pred_check
      _
    $region63: #{tpu_custom_call.1} parent=1 // pred_check_branch
      %1413 = sbr.rel (0) target = $region65
    $region64: #{tpu_custom_call.1} parent=1 // pred_region
      %s1415 = ssub.s32 1024, 1024
      %1416 = vsyncadd [#allocation4], %s1415
      %s1417 = sshll.u32 [#allocation13], 4
      %s1418 = int_to_ptr.vmem [resolvable:$true] %s1417
      %1423 = dma.vmem_to_hbm [thread:$0]  %s1418, 1024, %s9, [#allocation4], 256, 256, 16
    $region65: #{tpu_custom_call.1} parent=1 // pred_fallthru
      _
    // Predicated region
    $region66: #{tpu_custom_call.1} parent=1 // pred_check
      _
    $region67: #{tpu_custom_call.1} parent=1 // pred_check_branch
      %1425 = sbr.rel (0) target = $region69
    $region68: #{tpu_custom_call.1} parent=1 // pred_region
      %s1427 = ssub.s32 512, 512
      %1428 = vsyncadd [#allocation15], %s1427
      %s1429 = sshll.u32 [#allocation14], 4
      %s1430 = int_to_ptr.vmem [resolvable:$true] %s1429
      %1435 = dma.vmem_to_hbm [thread:$0]  %s1430, 512, %s10, [#allocation15], 128, 128, 8
    $region69: #{tpu_custom_call.1} parent=1 // pred_fallthru
      _
    // Predicated region
    $region70: #{tpu_custom_call.1} parent=1 // pred_check
      _
    $region71: #{tpu_custom_call.1} parent=1 // pred_check_branch
      %1437 = sbr.rel (0) target = $region73
    $region72: #{tpu_custom_call.1} parent=1 // pred_region
      %1438 = dma.done [#allocation4], 1024
    $region73: #{tpu_custom_call.1} parent=1 // pred_fallthru
      _
    // Predicated region
    $region74: #{tpu_custom_call.1} parent=1 // pred_check
      _
    $region75: #{tpu_custom_call.1} parent=1 // pred_check_branch
      %1440 = sbr.rel (0) target = $region77
    $region76: #{tpu_custom_call.1} parent=1 // pred_region
      %1441 = dma.done [#allocation15], 512
    $region77: #{tpu_custom_call.1} parent=1 // pred_fallthru
      _
    %1442 = vsyncpa [#allocation3], 1
    %1443 = vsyncpa [#allocation6], 1
    %1444 = vsyncpa [#allocation9], 1
    %1445 = vsyncpa [#allocation12], 1
    %1446 = vsyncpa [#allocation4], 1
    %1447 = vsyncpa [#allocation15], 1

</llo_original>
